<compile_context>
chip_gen: v7x
topology: tpu7x:2x2x1
jax: 0.10.0
libtpu: 0.0.40
codegen_flags: <defaults>
</compile_context>

<pallas_src>
import functools

import numpy as np
import jax
import jax.numpy as jnp
from jax import lax
from jax.experimental import pallas as pl
from jax.experimental.pallas import tpu as pltpu


def _s2d_kernel(sel_ref, x_ref, o_ref, *, bs, rk, lo, precision):
    # sel_ref: (bs*Lo, bs*Lo)  one-hot: sel[u, j*Lo + wo] = (u == wo*bs + j)
    # x_ref  : (R, bs*Lo)      rows = c*H + ho*bs + i      (R = bs * rk)
    # o_ref  : (bs, bs, Rk, Lo)
    sel = sel_ref[...]                                     # resident, loaded once
    for i in range(bs):                                    # bs is tiny -> static unroll
        # H de-interleave: sublane-strided load (stride on dim -2 is supported).
        xi = x_ref[pl.ds(i, rk, stride=bs), :]             # (Rk, bs*Lo), rows = (c, ho)
        # W de-interleave for all j at once on the MXU (K = N = bs*Lo, W-independent).
        y = jnp.dot(xi, sel, preferred_element_type=jnp.float32,
                    precision=precision)                   # (Rk, bs*Lo), cols = (j, wo)
        for j in range(bs):
            o_ref[i, j] = y[:, j * lo:(j + 1) * lo].astype(o_ref.dtype)


def _row_tile(total_rows, bs, bytes_per_row, target_bytes=4 << 20):
    """Largest row tile that divides total_rows, is a multiple of 8*bs (so the
    per-i sub-tile stays sublane aligned) and keeps one in+out block under
    target_bytes (~8 MiB double-buffered); falls back to the full extent.
    Per-generation tuning knob: raise target on v6e (128 MiB VMEM), keep or
    lower on v7x (64 MiB)."""
    quantum = 8 * bs
    limit = max(quantum, target_bytes // max(1, bytes_per_row))
    cap = min(total_rows, limit)
    best = None
    t = quantum
    while t <= cap:
        if total_rows % t == 0:
            best = t
        t += quantum
    return best if best is not None else total_rows


def space_to_depth(x, bs):
    """Pallas TPU implementation of SpaceToDepth.forward (NCHW)."""
    N, C, H, W = x.shape
    if bs == 1:
        return x
    assert H % bs == 0 and W % bs == 0, "H and W must be divisible by block_size"
    Ho, Wo = H // bs, W // bs
    dtype = x.dtype
    if not jnp.issubdtype(dtype, jnp.floating):
        # TODO(synk): integer inputs need a non-MXU copy path (v7x MXU has no
        # integer support); this model only feeds float activations.
        raise NotImplementedError("space_to_depth kernel supports float dtypes only")

    # Lane blocking: 128 output lanes per grid step when possible (unmasked
    # stores, W-independent MXU depth); otherwise one block of the full Wo.
    Lo = 128 if Wo % 128 == 0 else Wo
    Lw = bs * Lo
    rows = C * H                                   # rows of the free (N, C*H, W) view
    itemsize = x.dtype.itemsize
    R = _row_tile(rows, bs, 2 * Lw * itemsize)
    Rk = R // bs

    # Host-precomputed one-hot selector, fused over j:  sel[u, j*Lo+wo] = (u == wo*bs + j)
    u = np.arange(Lw)[:, None]
    col = np.arange(Lw)[None, :]
    sel = jnp.asarray(u == (col % Lo) * bs + (col // Lo), dtype=dtype)   # (bs*Lo, bs*Lo)

    # One-hot matmul must be an exact copy: bf16 operands are exact at DEFAULT
    # (f32 accumulation); f32/f16 need HIGHEST to avoid bf16 truncation.
    precision = (lax.Precision.DEFAULT if dtype == jnp.bfloat16
                 else lax.Precision.HIGHEST)

    # Free row-major reshape: x_r[n, c*H + h, w] = x[n, c, h, w]
    x_r = x.reshape(N, rows, W)
    grid = (N, rows // R, Wo // Lo)

    kernel = functools.partial(_s2d_kernel, bs=bs, rk=Rk, lo=Lo, precision=precision)

    out5 = pl.pallas_call(
        kernel,
        out_shape=jax.ShapeDtypeStruct((N, bs, bs, C * Ho, Wo), dtype),
        grid=grid,
        in_specs=[
            # Constant index_map -> selector DMA'd once, stays VMEM-resident.
            pl.BlockSpec((Lw, Lw), lambda n, rb, lb: (0, 0)),
            pl.BlockSpec((None, R, Lw), lambda n, rb, lb: (n, rb, lb)),
        ],
        out_specs=pl.BlockSpec((None, bs, bs, Rk, Lo),
                               lambda n, rb, lb: (n, 0, 0, rb, lb)),
        compiler_params=pltpu.CompilerParams(
            dimension_semantics=("parallel", "parallel", "parallel")),
        cost_estimate=pl.CostEstimate(
            flops=2 * N * C * H * W * bs * Lo,
            transcendentals=0,
            bytes_accessed=2 * N * C * H * W * itemsize),
    )(sel, x_r)

    # Free row-major reshape: (n, i, j, c*Ho+ho, wo) -> (n, (i*bs+j)*C + c, ho, wo)
    return out5.reshape(N, bs * bs * C, Ho, Wo)


def ref_space_to_depth(x, bs):
    """Pure-JAX mirror of the PyTorch module (reference)."""
    N, C, H, W = x.shape
    y = x.reshape(N, C, H // bs, bs, W // bs, bs)
    y = jnp.transpose(y, (0, 3, 5, 1, 2, 4))
    return y.reshape(N, C * bs * bs, H // bs, W // bs)


if __name__ == "__main__":
    key = jax.random.PRNGKey(0)

    N, C, H, W = 2, 4, 16, 16
    bs = 2
    x = jax.random.normal(key, (N, C, H, W), jnp.float32)

    out = jax.block_until_ready(space_to_depth(x, bs))
    ref = jax.block_until_ready(ref_space_to_depth(x, bs))

    assert out.shape == (N, C * bs * bs, H // bs, W // bs), out.shape
    assert np.allclose(np.asarray(out), np.asarray(ref), atol=1e-6, rtol=0.0), (
        float(np.max(np.abs(np.asarray(out) - np.asarray(ref)))))
    print("KERNEL_OK")
</pallas_src>

<mosaic_0001>
module attributes {stable_mosaic.version = 11 : i64} {
  func.func @_s2d_kernel(%arg0: i32, %arg1: i32, %arg2: i32, %arg3: memref<16x16xf32, #tpu.memory_space<vmem>>, %arg4: memref<1x64x16xf32, #tpu.memory_space<vmem>>, %arg5: memref<1x2x2x32x8xf32, #tpu.memory_space<vmem>>) attributes {dimension_semantics = [#tpu.dimension_semantics<parallel>, #tpu.dimension_semantics<parallel>, #tpu.dimension_semantics<parallel>], iteration_bounds = array<i64: 2, 1, 1>, scalar_prefetch = 0 : i64, scratch_operands = 0 : i64, tpu.core_type = #tpu.core_type<tc>, window_params = [{pipeline_mode = #tpu.pipeline_mode<synchronous>, transform_indices = @transform_0, window_bounds = array<i64: 16, 16>}, {transform_indices = @transform_1, window_bounds = array<i64: 1, 64, 16>}, {transform_indices = @transform_2, window_bounds = array<i64: 1, 2, 2, 32, 8>}]} {
    %c0 = arith.constant 0 : index
    %c0_0 = arith.constant 0 : index
    %0 = vector.load %arg3[%c0, %c0_0] : memref<16x16xf32, #tpu.memory_space<vmem>>, vector<16x16xf32>
    %c0_1 = arith.constant 0 : index
    %c0_2 = arith.constant 0 : index
    %c0_3 = arith.constant 0 : index
    %1 = tpu.strided_load %arg4[%c0_1, %c0_2, %c0_3] {strides = array<i32: 1, 2, 1>} : memref<1x64x16xf32, #tpu.memory_space<vmem>>, vector<1x32x16xf32>
    %2 = vector.shape_cast %1 : vector<1x32x16xf32> to vector<32x16xf32>
    %cst = arith.constant dense<0.000000e+00> : vector<32x16xf32>
    %3 = tpu.matmul %2, %0, %cst {dimension_numbers = #tpu.dot_dimension_numbers<[1], [0], [0], [1], [0, 0, 1, 1], [], []>, precision = #tpu.contract_precision<fp32>} : vector<32x16xf32>, vector<16x16xf32>, vector<32x16xf32> -> vector<32x16xf32>
    %4 = vector.extract_strided_slice %3 {offsets = [0, 0], sizes = [32, 8], strides = [1, 1]} : vector<32x16xf32> to vector<32x8xf32>
    %c0_4 = arith.constant 0 : index
    %c0_5 = arith.constant 0 : index
    %c0_6 = arith.constant 0 : index
    %c0_7 = arith.constant 0 : index
    %c0_8 = arith.constant 0 : index
    %5 = vector.load %arg5[%c0_4, %c0_5, %c0_6, %c0_7, %c0_8] : memref<1x2x2x32x8xf32, #tpu.memory_space<vmem>>, vector<1x1x1x32x8xf32>
    %6 = vector.shape_cast %5 : vector<1x1x1x32x8xf32> to vector<32x8xf32>
    %7 = vector.shape_cast %4 : vector<32x8xf32> to vector<1x1x1x32x8xf32>
    tpu.vector_store %arg5[%c0_4, %c0_5, %c0_6, %c0_7, %c0_8], %7 {strides = array<i32>} : memref<1x2x2x32x8xf32, #tpu.memory_space<vmem>>, vector<1x1x1x32x8xf32>,
    %8 = vector.extract_strided_slice %3 {offsets = [0, 8], sizes = [32, 8], strides = [1, 1]} : vector<32x16xf32> to vector<32x8xf32>
    %c0_9 = arith.constant 0 : index
    %c0_10 = arith.constant 0 : index
    %c1 = arith.constant 1 : index
    %c0_11 = arith.constant 0 : index
    %c0_12 = arith.constant 0 : index
    %9 = vector.load %arg5[%c0_9, %c0_10, %c1, %c0_11, %c0_12] : memref<1x2x2x32x8xf32, #tpu.memory_space<vmem>>, vector<1x1x1x32x8xf32>
    %10 = vector.shape_cast %9 : vector<1x1x1x32x8xf32> to vector<32x8xf32>
    %11 = vector.shape_cast %8 : vector<32x8xf32> to vector<1x1x1x32x8xf32>
    tpu.vector_store %arg5[%c0_9, %c0_10, %c1, %c0_11, %c0_12], %11 {strides = array<i32>} : memref<1x2x2x32x8xf32, #tpu.memory_space<vmem>>, vector<1x1x1x32x8xf32>,
    %c0_13 = arith.constant 0 : index
    %c1_14 = arith.constant 1 : index
    %c0_15 = arith.constant 0 : index
    %12 = tpu.strided_load %arg4[%c0_13, %c1_14, %c0_15] {strides = array<i32: 1, 2, 1>} : memref<1x64x16xf32, #tpu.memory_space<vmem>>, vector<1x32x16xf32>
    %13 = vector.shape_cast %12 : vector<1x32x16xf32> to vector<32x16xf32>
    %cst_16 = arith.constant dense<0.000000e+00> : vector<32x16xf32>
    %14 = tpu.matmul %13, %0, %cst_16 {dimension_numbers = #tpu.dot_dimension_numbers<[1], [0], [0], [1], [0, 0, 1, 1], [], []>, precision = #tpu.contract_precision<fp32>} : vector<32x16xf32>, vector<16x16xf32>, vector<32x16xf32> -> vector<32x16xf32>
    %15 = vector.extract_strided_slice %14 {offsets = [0, 0], sizes = [32, 8], strides = [1, 1]} : vector<32x16xf32> to vector<32x8xf32>
    %c0_17 = arith.constant 0 : index
    %c1_18 = arith.constant 1 : index
    %c0_19 = arith.constant 0 : index
    %c0_20 = arith.constant 0 : index
    %c0_21 = arith.constant 0 : index
    %16 = vector.load %arg5[%c0_17, %c1_18, %c0_19, %c0_20, %c0_21] : memref<1x2x2x32x8xf32, #tpu.memory_space<vmem>>, vector<1x1x1x32x8xf32>
    %17 = vector.shape_cast %16 : vector<1x1x1x32x8xf32> to vector<32x8xf32>
    %18 = vector.shape_cast %15 : vector<32x8xf32> to vector<1x1x1x32x8xf32>
    tpu.vector_store %arg5[%c0_17, %c1_18, %c0_19, %c0_20, %c0_21], %18 {strides = array<i32>} : memref<1x2x2x32x8xf32, #tpu.memory_space<vmem>>, vector<1x1x1x32x8xf32>,
    %19 = vector.extract_strided_slice %14 {offsets = [0, 8], sizes = [32, 8], strides = [1, 1]} : vector<32x16xf32> to vector<32x8xf32>
    %c0_22 = arith.constant 0 : index
    %c1_23 = arith.constant 1 : index
    %c1_24 = arith.constant 1 : index
    %c0_25 = arith.constant 0 : index
    %c0_26 = arith.constant 0 : index
    %20 = vector.load %arg5[%c0_22, %c1_23, %c1_24, %c0_25, %c0_26] : memref<1x2x2x32x8xf32, #tpu.memory_space<vmem>>, vector<1x1x1x32x8xf32>
    %21 = vector.shape_cast %20 : vector<1x1x1x32x8xf32> to vector<32x8xf32>
    %22 = vector.shape_cast %19 : vector<32x8xf32> to vector<1x1x1x32x8xf32>
    tpu.vector_store %arg5[%c0_22, %c1_23, %c1_24, %c0_25, %c0_26], %22 {strides = array<i32>} : memref<1x2x2x32x8xf32, #tpu.memory_space<vmem>>, vector<1x1x1x32x8xf32>,
    return
  }
  func.func @transform_0(%arg0: i32, %arg1: i32, %arg2: i32) -> (i32, i32) {
    %c0_i32 = arith.constant 0 : i32
    %c0_i32_0 = arith.constant 0 : i32
    %c0_i32_1 = arith.constant 0 : i32
    return %c0_i32, %c0_i32_0 : i32, i32
  }
  func.func @transform_1(%arg0: i32, %arg1: i32, %arg2: i32) -> (i32, i32, i32) {
    %c0_i32 = arith.constant 0 : i32
    return %arg0, %arg1, %arg2 : i32, i32, i32
  }
  func.func @transform_2(%arg0: i32, %arg1: i32, %arg2: i32) -> (i32, i32, i32, i32, i32) {
    %c0_i32 = arith.constant 0 : i32
    %c0_i32_0 = arith.constant 0 : i32
    %c0_i32_1 = arith.constant 0 : i32
    return %arg0, %c0_i32, %c0_i32_0, %arg1, %arg2 : i32, i32, i32, i32, i32
  }
}

</mosaic_0001>

<llo_original>
// kernel: tpu_custom_call.1
$region0: #{tpu_custom_call.1}
  #allocation0 [shape = 'u32[]', space=smem, size = 0x4, offset = 0x4, fixed_abs, tag = 'smem constant byte address 0x4 - core index']
  #allocation1 [shape = 'u32[144,128]{1,0:T(1,128)}', space=vmem, size = 0x12000, scoped, tag = 'internal scratch']
  %s0 = inlined_call_operand.vmem [shape: f32[16,16], index: 0, kind: input, shape index: {}]
  %s1 = inlined_call_operand.vmem [shape: f32[2,64,16], index: 1, kind: input, shape index: {}]
  %s2 = inlined_call_operand.vmem [shape: f32[2,2,2,32,8], index: 2, kind: output, shape index: {}]
  %s3 = sld [smem:[#allocation0]]
  $region41: #{tpu_custom_call.1} parent=0
    _
  %s5 = ssub.s32 1, %s3
  %s6 = scalar_select 0, %s5, %s3
  loop: start=0, step=1, limit=4
  $region2: #{tpu_custom_call.1} parent=0 // loop_pre_header
    _
  $region3: #{tpu_custom_call.1} parent=0 // loop_header
    %s8 = sphi 0, %s12
    %p9 = scmp.ge.s32.totalorder %s8, 4
    %s15 = sphi 0, %s34
    %s16 = sphi 0, %s30
    %s17 = sphi 0, %s26
    %s18 = sphi 0, %s15
    %s19 = sphi 0, %s16
    %s20 = sphi 0, %s17
    %s21 = sphi 0, %s18
    %s22 = sphi 0, %s19
    %s23 = sphi 0, %s20
    %s35 = sphi 0, %s35
    %s37 = sphi 0, %s35
    %s38 = sphi 0, %s37
    %s52 = sphi 0, %s38
    %s62 = sphi 0, %s64
    %s65 = sphi 0, %s62
    %s66 = sphi 0, %s65
    %s82 = sphi 0, %s66
    %s92 = sphi 0, %s94
    %s95 = sphi 0, %s92
    %s96 = sphi 0, %s95
    %s112 = sphi 0, %s96
  $region4: #{tpu_custom_call.1} parent=0 // loop_header_branch
    %11 = sbr.rel (%p9) target = $region8
  $region5: #{tpu_custom_call.1} parent=0 // loop_body
    %s13 = ssub.s32 %s8, 1
    %s14 = ssub.s32 %s8, 2
    %s24 = sadd.s32 1, %s17
    %p25 = scmp.ge.s32.totalorder %s24, 1
    %s26 = scalar_select %p25, 0, %s24
    %s27 = sadd.s32 1, %s16
    %s28 = scalar_select %p25, %s27, %s16
    %p29 = scmp.ge.s32.totalorder %s28, 1
    %s30 = scalar_select %p29, 0, %s28
    %s31 = sadd.s32 1, %s15
    %s32 = scalar_select %p29, %s31, %s15
    %p33 = scmp.ge.s32.totalorder %s32, 2
    %s34 = scalar_select %p33, 0, %s32
    %s36 = sadd.s32 %s35, 1
    %p39 = scmp.eq.s32.totalorder %s8, 1
    %p40 = scmp.ne.s32.totalorder %s35, %s37
    %p41 = scmp.eq.s32.totalorder %s8, 0
    %p42 = por %p40, %p41
    %p43 = scmp.ne.s32.totalorder %s35, %s37
    %p44 = scmp.eq.s32.totalorder %s13, 1
    %p45 = por %p43, %p44
    %p46 = scmp.ne.s32.totalorder %s37, %s38
    %p47 = scmp.eq.s32.totalorder %s13, 0
    %p48 = por %p46, %p47
    %p49 = scmp.ne.s32.totalorder %s37, %s38
    %p50 = scmp.eq.s32.totalorder %s14, 1
    %p51 = por %p49, %p50
    %p53 = scmp.ne.s32.totalorder %s38, %s52
    %p54 = scmp.eq.s32.totalorder %s14, 0
    %p55 = por %p53, %p54
    %s56 = ssub.s32 %s15, %s34
    %s57 = ssub.s32 %s16, %s30
    %s58 = sor.u32 %s56, %s57
    %s59 = ssub.s32 %s17, %s26
    %s60 = sor.u32 %s58, %s59
    %p61 = scmp.eq.s32.totalorder %s60, 0
    %s63 = sadd.s32 %s62, 1
    %s64 = scalar_select %p61, %s62, %s63
    %p67 = pneg %p61
    %p68 = scmp.eq.s32.totalorder %s8, 1
    %p69 = por %p67, %p68
    %p70 = scmp.ne.s32.totalorder %s62, %s65
    %p71 = scmp.eq.s32.totalorder %s8, 0
    %p72 = por %p70, %p71
    %p73 = scmp.ne.s32.totalorder %s62, %s65
    %p74 = scmp.eq.s32.totalorder %s13, 1
    %p75 = por %p73, %p74
    %p76 = scmp.ne.s32.totalorder %s65, %s66
    %p77 = scmp.eq.s32.totalorder %s13, 0
    %p78 = por %p76, %p77
    %p79 = scmp.ne.s32.totalorder %s65, %s66
    %p80 = scmp.eq.s32.totalorder %s14, 1
    %p81 = por %p79, %p80
    %p83 = scmp.ne.s32.totalorder %s66, %s82
    %p84 = scmp.eq.s32.totalorder %s14, 0
    %p85 = por %p83, %p84
    %s86 = ssub.s32 %s15, %s34
    %s87 = ssub.s32 %s16, %s30
    %s88 = sor.u32 %s86, %s87
    %s89 = ssub.s32 %s17, %s26
    %s90 = sor.u32 %s88, %s89
    %p91 = scmp.eq.s32.totalorder %s90, 0
    %s93 = sadd.s32 %s92, 1
    %s94 = scalar_select %p91, %s92, %s93
    %p97 = pneg %p91
    %p98 = scmp.eq.s32.totalorder %s8, 1
    %p99 = por %p97, %p98
    %p100 = scmp.ne.s32.totalorder %s92, %s95
    %p101 = scmp.eq.s32.totalorder %s8, 0
    %p102 = por %p100, %p101
    %p103 = scmp.ne.s32.totalorder %s92, %s95
    %p104 = scmp.eq.s32.totalorder %s13, 1
    %p105 = por %p103, %p104
    %p106 = scmp.ne.s32.totalorder %s95, %s96
    %p107 = scmp.eq.s32.totalorder %s13, 0
    %p108 = por %p106, %p107
    %p109 = scmp.ne.s32.totalorder %s95, %s96
    %p110 = scmp.eq.s32.totalorder %s14, 1
    %p111 = por %p109, %p110
    %p113 = scmp.ne.s32.totalorder %s96, %s112
    %p114 = scmp.eq.s32.totalorder %s14, 0
    %p115 = por %p113, %p114
    %p116 = scmp.le.s32.totalorder 1, %s8
    %p117 = scmp.lt.s32.totalorder %s8, 3
    %p118 = pnand %p116, %p117
    %p119 = pneg %p118
    // Predicated region
    $region9: #{tpu_custom_call.1} parent=5 // pred_check
      _
    $region10: #{tpu_custom_call.1} parent=5 // pred_check_branch
      %121 = sbr.rel (%p118) target = $region12
    $region11: #{tpu_custom_call.1} parent=5 // pred_region
      %s122 = ssub.s32 %s8, 1
      // Predicated region
      $region13: #{tpu_custom_call.1} parent=11 // pred_check
        %p123 = pneg %p48
      $region14: #{tpu_custom_call.1} parent=11 // pred_check_branch
        %125 = sbr.rel (%p123) target = $region16
      $region15: #{tpu_custom_call.1} parent=11 // pred_region
        _
      $region16: #{tpu_custom_call.1} parent=11 // pred_fallthru
        _
    $region12: #{tpu_custom_call.1} parent=5 // pred_fallthru
      _
    %p126 = scmp.lt.s32.totalorder %s8, 2
    // Predicated region
    $region17: #{tpu_custom_call.1} parent=5 // pred_check
      %p127 = pneg %p126
    $region18: #{tpu_custom_call.1} parent=5 // pred_check_branch
      %129 = sbr.rel (%p127) target = $region20
    $region19: #{tpu_custom_call.1} parent=5 // pred_region
      // Predicated region
      $region21: #{tpu_custom_call.1} parent=19 // pred_check
        %p130 = pneg %p72
      $region22: #{tpu_custom_call.1} parent=19 // pred_check_branch
        %132 = sbr.rel (%p130) target = $region24
      $region23: #{tpu_custom_call.1} parent=19 // pred_region
        %s133 = smul.u32 8, %s16
        %p134 = scmp.lt.s32.totalorder %s15, 1
        %s135 = scalar_select %p134, %s15, 1
        %p136 = scmp.lt.s32.totalorder %s133, 7
        %s137 = scalar_select %p136, %s133, 7
        %p138 = scmp.lt.s32.totalorder %s17, 0
        %s139 = scalar_select %p138, %s17, 0
        %s140 = sadd.s32 %s139, %s137
        %s141 = smul.addr %s135, 8
        %s142 = sadd.s32 %s140, %s141
        %s143 = smul.addr %s142, 8
        %s144 = scalar_lea.vmem %s1, %s143
        %s145 = smul.u32 8, %s16
      $region24: #{tpu_custom_call.1} parent=19 // pred_fallthru
        _
    $region20: #{tpu_custom_call.1} parent=5 // pred_fallthru
      _
    %p146 = scmp.le.s32.totalorder 1, %s8
    %p147 = scmp.lt.s32.totalorder %s8, 3
    %p148 = pnand %p146, %p147
    %p149 = pneg %p148
    // Predicated region
    $region25: #{tpu_custom_call.1} parent=5 // pred_check
      _
    $region26: #{tpu_custom_call.1} parent=5 // pred_check_branch
      %151 = sbr.rel (%p148) target = $region28
    $region27: #{tpu_custom_call.1} parent=5 // pred_region
      %s152 = ssub.s32 %s8, 1
      %p153 = pneg %p48
      %p154 = pneg %p45
      %s155 = smul.u32 8, %s19
      %p156 = scmp.lt.s32.totalorder %s18, 1
      %s157 = scalar_select %p156, %s18, 1
      %p158 = scmp.lt.s32.totalorder %s155, 7
      %s159 = scalar_select %p158, %s155, 7
      %p160 = scmp.lt.s32.totalorder %s20, 0
      %s161 = scalar_select %p160, %s20, 0
      %s162 = sadd.s32 %s161, %s159
      %s163 = smul.addr %s157, 8
      %s164 = sadd.s32 %s162, %s163
      %s165 = smul.addr %s164, 8
      %s166 = scalar_lea.vmem %s1, %s165
      %p167 = pneg %p78
      %p168 = pneg %p75
      %p169 = pneg %p108
      %p170 = pneg %p105
      %s171 = smul.u32 4, %s19
      %p172 = scmp.lt.s32.totalorder %s18, 1
      %s173 = scalar_select %p172, %s18, 1
      %p174 = scmp.lt.s32.totalorder %s171, 3
      %s175 = scalar_select %p174, %s171, 3
      %p176 = scmp.lt.s32.totalorder %s20, 0
      %s177 = scalar_select %p176, %s20, 0
      %s178 = sadd.s32 %s177, %s175
      %s179 = smul.addr %s173, 16
      %s180 = sadd.s32 %s178, %s179
      %s181 = smul.addr %s180, 8
      %s182 = scalar_lea.vmem %s2, %s181
      %s183 = smul.u32 8, %s19
      %p184 = scmp.lt.s32.totalorder %s18, 1
      %s185 = scalar_select %p184, %s18, 1
      %p186 = scmp.lt.s32.totalorder %s183, 7
      %s187 = scalar_select %p186, %s183, 7
      %p188 = scmp.lt.s32.totalorder %s20, 0
      %s189 = scalar_select %p188, %s20, 0
      %s190 = sadd.s32 %s189, %s187
      %s191 = smul.addr %s185, 8
      %s192 = sadd.s32 %s190, %s191
      %s193 = smul.addr %s192, 8
      %s194 = scalar_lea.vmem %s1, %s193
      %s195 = smul.u32 8, %s19
      %s196 = smul.u32 4, %s19
      %p197 = scmp.lt.s32.totalorder %s18, 1
      %s198 = scalar_select %p197, %s18, 1
      %p199 = scmp.lt.s32.totalorder %s196, 3
      %s200 = scalar_select %p199, %s196, 3
      %p201 = scmp.lt.s32.totalorder %s20, 0
      %s202 = scalar_select %p201, %s20, 0
      %s203 = sadd.s32 %s202, %s200
      %s204 = smul.addr %s198, 16
      %s205 = sadd.s32 %s203, %s204
      %s206 = smul.addr %s205, 8
      %s207 = scalar_lea.vmem %s2, %s206
      %s208 = smul.u32 4, %s19
      %v209 = vld [vmem:[%s0] sm:$0xff]
      %v210 = vld [vmem:[%s0 + $0x8] sm:$0xff]
      %v211 = vld [vmem:[%s194] ss:$2 sm:$0xff]
      %s212 = scalar_lea.vmem %s194, 16
      %v213 = vld [vmem:[%s212] ss:$2 sm:$0xff]
      %s214 = scalar_lea.vmem %s194, 32
      %v215 = vld [vmem:[%s214] ss:$2 sm:$0xff]
      %s216 = scalar_lea.vmem %s194, 48
      %v217 = vld [vmem:[%s216] ss:$2 sm:$0xff]
      %vm218 = vcmask 130048
      %v220 = vsel %vm218, %v211, 0
      %v223 = vsel %vm218, %v213, 0
      %v226 = vsel %vm218, %v215, 0
      %v229 = vsel %vm218, %v217, 0
      %231 = vmatprep.subr.mxu0 0.0
      %v232 = vand.u32 %v209, 4294901760
      %233 = vmatpush1.msra.mxu0 %v232
      %234 = vmatprep.subr.mxu0 0.0
      %v235 = vand.u32 %v210, 4294901760
      %236 = vmatpush1.msra.mxu0 %v235
      %237 = vmatprep.subr.mxu0 0.0
      %238 = vmatpush1.msra.mxu0 0.0
      %239 = vmatprep.subr.mxu0 0.0
      %240 = vmatpush1.msra.mxu0 0.0
      %241 = vmatprep.subr.mxu0 0.0
      %242 = vmatpush1.msra.mxu0 0.0
      %243 = vmatprep.subr.mxu0 0.0
      %244 = vmatpush1.msra.mxu0 0.0
      %245 = vmatprep.subr.mxu0 0.0
      %246 = vmatpush1.msra.mxu0 0.0
      %247 = vmatprep.subr.mxu0 0.0
      %248 = vmatpush1.msra.mxu0 0.0
      %249 = vmatprep.subr.mxu0 0.0
      %250 = vmatpush1.msra.mxu0 0.0
      %251 = vmatprep.subr.mxu0 0.0
      %252 = vmatpush1.msra.mxu0 0.0
      %253 = vmatprep.subr.mxu0 0.0
      %254 = vmatpush1.msra.mxu0 0.0
      %255 = vmatprep.subr.mxu0 0.0
      %256 = vmatpush1.msra.mxu0 0.0
      %257 = vmatprep.subr.mxu0 0.0
      %258 = vmatpush1.msra.mxu0 0.0
      %259 = vmatprep.subr.mxu0 0.0
      %260 = vmatpush1.msra.mxu0 0.0
      %261 = vmatprep.subr.mxu0 0.0
      %262 = vmatpush1.msra.mxu0 0.0
      %263 = vmatprep.subr.mxu0 0.0
      %264 = vmatpush1.msra.mxu0 0.0
      %265 = vmatprep.subr.mxu0 0.0
      %266 = vmatpush1.msra.mxu0 0.0
      %267 = vmatprep.subr.mxu0 0.0
      %268 = vmatpush1.msra.mxu0 0.0
      %269 = vmatprep.subr.mxu0 0.0
      %270 = vmatpush1.msra.mxu0 0.0
      %271 = vmatprep.subr.mxu0 0.0
      %272 = vmatpush1.msra.mxu0 0.0
      %273 = vmatprep.subr.mxu0 0.0
      %274 = vmatpush1.msra.mxu0 0.0
      %275 = vmatprep.subr.mxu0 0.0
      %276 = vmatpush1.msra.mxu0 0.0
      %277 = vmatprep.subr.mxu0 0.0
      %278 = vmatpush1.msra.mxu0 0.0
      %279 = vmatprep.subr.mxu0 0.0
      %280 = vmatpush1.msra.mxu0 0.0
      %281 = vmatprep.subr.mxu0 0.0
      %282 = vmatpush1.msra.mxu0 0.0
      %283 = vmatprep.subr.mxu0 0.0
      %284 = vmatpush1.msra.mxu0 0.0
      %285 = vmatprep.subr.mxu0 0.0
      %286 = vmatpush1.msra.mxu0 0.0
      %287 = vmatprep.subr.mxu0 0.0
      %288 = vmatpush1.msra.mxu0 0.0
      %289 = vmatprep.subr.mxu0 0.0
      %290 = vmatpush1.msra.mxu0 0.0
      %291 = vmatprep.subr.mxu0 0.0
      %292 = vmatpush1.msra.mxu0 0.0
      %293 = vmatprep.subr.mxu0 0.0
      %294 = vmatpush1.msra.mxu0 0.0
      %295 = vmatprep.subr.mxu0 0.0
      %296 = vmatpush1.msra.mxu0 0.0
      %297 = vmatprep.mubr.f32.mxu0 0.0
      %v298 = vand.u32 %v220, 4294901760
      %v299 = vsub.f32 %v220, %v298
      %v300 = vand.u32 %v299, 4294901760
      %v301 = vsub.f32 %v299, %v300
      %v302 = vand.u32 %v301, 4294901760
      %303 = vmatmul.mubr.f32.gmra.mrb[0].mxu0 %v302
      %v304 = vpop.f32.mrb[0].mxu0
      %v305 = vadd.f32 0.0, %v304
      %v306 = vpop.f32.mrb[0].mxu0
      %307 = vmatprep.mubr.f32.mxu0 0.0
      %v308 = vand.u32 %v223, 4294901760
      %v309 = vsub.f32 %v223, %v308
      %v310 = vand.u32 %v309, 4294901760
      %v311 = vsub.f32 %v309, %v310
      %v312 = vand.u32 %v311, 4294901760
      %313 = vmatmul.mubr.f32.gmra.mrb[0].mxu0 %v312
      %v314 = vpop.f32.mrb[0].mxu0
      %v315 = vadd.f32 0.0, %v314
      %v316 = vpop.f32.mrb[0].mxu0
      %317 = vmatprep.mubr.f32.mxu0 0.0
      %v318 = vand.u32 %v226, 4294901760
      %v319 = vsub.f32 %v226, %v318
      %v320 = vand.u32 %v319, 4294901760
      %v321 = vsub.f32 %v319, %v320
      %v322 = vand.u32 %v321, 4294901760
      %323 = vmatmul.mubr.f32.gmra.mrb[0].mxu0 %v322
      %v324 = vpop.f32.mrb[0].mxu0
      %v325 = vadd.f32 0.0, %v324
      %v326 = vpop.f32.mrb[0].mxu0
      %327 = vmatprep.mubr.f32.mxu0 0.0
      %v328 = vand.u32 %v229, 4294901760
      %v329 = vsub.f32 %v229, %v328
      %v330 = vand.u32 %v329, 4294901760
      %v331 = vsub.f32 %v329, %v330
      %v332 = vand.u32 %v331, 4294901760
      %333 = vmatmul.mubr.f32.gmra.mrb[0].mxu0 %v332
      %v334 = vpop.f32.mrb[0].mxu0
      %v335 = vadd.f32 0.0, %v334
      %v336 = vpop.f32.mrb[0].mxu0
      %337 = vdwg.mxu0
      %338 = vmatprep.subr.mxu0 0.0
      %v339 = vand.u32 %v209, 4294901760
      %v340 = vsub.f32 %v209, %v339
      %v341 = vand.u32 %v340, 4294901760
      %v342 = vsub.f32 %v340, %v341
      %v343 = vand.u32 %v342, 4294901760
      %344 = vmatpush1.msra.mxu0 %v343
      %345 = vmatprep.subr.mxu0 0.0
      %v346 = vand.u32 %v210, 4294901760
      %v347 = vsub.f32 %v210, %v346
      %v348 = vand.u32 %v347, 4294901760
      %v349 = vsub.f32 %v347, %v348
      %v350 = vand.u32 %v349, 4294901760
      %351 = vmatpush1.msra.mxu0 %v350
      %352 = vmatprep.subr.mxu0 0.0
      %353 = vmatpush1.msra.mxu0 0.0
      %354 = vmatprep.subr.mxu0 0.0
      %355 = vmatpush1.msra.mxu0 0.0
      %356 = vmatprep.subr.mxu0 0.0
      %357 = vmatpush1.msra.mxu0 0.0
      %358 = vmatprep.subr.mxu0 0.0
      %359 = vmatpush1.msra.mxu0 0.0
      %360 = vmatprep.subr.mxu0 0.0
      %361 = vmatpush1.msra.mxu0 0.0
      %362 = vmatprep.subr.mxu0 0.0
      %363 = vmatpush1.msra.mxu0 0.0
      %364 = vmatprep.subr.mxu0 0.0
      %365 = vmatpush1.msra.mxu0 0.0
      %366 = vmatprep.subr.mxu0 0.0
      %367 = vmatpush1.msra.mxu0 0.0
      %368 = vmatprep.subr.mxu0 0.0
      %369 = vmatpush1.msra.mxu0 0.0
      %370 = vmatprep.subr.mxu0 0.0
      %371 = vmatpush1.msra.mxu0 0.0
      %372 = vmatprep.subr.mxu0 0.0
      %373 = vmatpush1.msra.mxu0 0.0
      %374 = vmatprep.subr.mxu0 0.0
      %375 = vmatpush1.msra.mxu0 0.0
      %376 = vmatprep.subr.mxu0 0.0
      %377 = vmatpush1.msra.mxu0 0.0
      %378 = vmatprep.subr.mxu0 0.0
      %379 = vmatpush1.msra.mxu0 0.0
      %380 = vmatprep.subr.mxu0 0.0
      %381 = vmatpush1.msra.mxu0 0.0
      %382 = vmatprep.subr.mxu0 0.0
      %383 = vmatpush1.msra.mxu0 0.0
      %384 = vmatprep.subr.mxu0 0.0
      %385 = vmatpush1.msra.mxu0 0.0
      %386 = vmatprep.subr.mxu0 0.0
      %387 = vmatpush1.msra.mxu0 0.0
      %388 = vmatprep.subr.mxu0 0.0
      %389 = vmatpush1.msra.mxu0 0.0
      %390 = vmatprep.subr.mxu0 0.0
      %391 = vmatpush1.msra.mxu0 0.0
      %392 = vmatprep.subr.mxu0 0.0
      %393 = vmatpush1.msra.mxu0 0.0
      %394 = vmatprep.subr.mxu0 0.0
      %395 = vmatpush1.msra.mxu0 0.0
      %396 = vmatprep.subr.mxu0 0.0
      %397 = vmatpush1.msra.mxu0 0.0
      %398 = vmatprep.subr.mxu0 0.0
      %399 = vmatpush1.msra.mxu0 0.0
      %400 = vmatprep.subr.mxu0 0.0
      %401 = vmatpush1.msra.mxu0 0.0
      %402 = vmatprep.subr.mxu0 0.0
      %403 = vmatpush1.msra.mxu0 0.0
      %404 = vmatprep.subr.mxu0 0.0
      %405 = vmatpush1.msra.mxu0 0.0
      %406 = vmatprep.subr.mxu0 0.0
      %407 = vmatpush1.msra.mxu0 0.0
      %408 = vmatprep.subr.mxu0 0.0
      %409 = vmatpush1.msra.mxu0 0.0
      %410 = vmatprep.subr.mxu0 0.0
      %411 = vmatpush1.msra.mxu0 0.0
      %412 = vmatprep.mubr.f32.mxu0 0.0
      %v413 = vand.u32 %v220, 4294901760
      %414 = vmatmul.mubr.f32.gmra.mrb[0].mxu0 %v413
      %v415 = vpop.f32.mrb[0].mxu0
      %v416 = vadd.f32 %v305, %v415
      %v417 = vpop.f32.mrb[0].mxu0
      %418 = vmatprep.mubr.f32.mxu0 0.0
      %v419 = vand.u32 %v223, 4294901760
      %420 = vmatmul.mubr.f32.gmra.mrb[0].mxu0 %v419
      %v421 = vpop.f32.mrb[0].mxu0
      %v422 = vadd.f32 %v315, %v421
      %v423 = vpop.f32.mrb[0].mxu0
      %424 = vmatprep.mubr.f32.mxu0 0.0
      %v425 = vand.u32 %v226, 4294901760
      %426 = vmatmul.mubr.f32.gmra.mrb[0].mxu0 %v425
      %v427 = vpop.f32.mrb[0].mxu0
      %v428 = vadd.f32 %v325, %v427
      %v429 = vpop.f32.mrb[0].mxu0
      %430 = vmatprep.mubr.f32.mxu0 0.0
      %v431 = vand.u32 %v229, 4294901760
      %432 = vmatmul.mubr.f32.gmra.mrb[0].mxu0 %v431
      %v433 = vpop.f32.mrb[0].mxu0
      %v434 = vadd.f32 %v335, %v433
      %v435 = vpop.f32.mrb[0].mxu0
      %436 = vdwg.mxu0
      %437 = vmatprep.subr.mxu0 0.0
      %v438 = vand.u32 %v209, 4294901760
      %v439 = vsub.f32 %v209, %v438
      %440 = vmatpush1.msra.mxu0 %v439
      %441 = vmatprep.subr.mxu0 0.0
      %v442 = vand.u32 %v210, 4294901760
      %v443 = vsub.f32 %v210, %v442
      %444 = vmatpush1.msra.mxu0 %v443
      %445 = vmatprep.subr.mxu0 0.0
      %446 = vmatpush1.msra.mxu0 0.0
      %447 = vmatprep.subr.mxu0 0.0
      %448 = vmatpush1.msra.mxu0 0.0
      %449 = vmatprep.subr.mxu0 0.0
      %450 = vmatpush1.msra.mxu0 0.0
      %451 = vmatprep.subr.mxu0 0.0
      %452 = vmatpush1.msra.mxu0 0.0
      %453 = vmatprep.subr.mxu0 0.0
      %454 = vmatpush1.msra.mxu0 0.0
      %455 = vmatprep.subr.mxu0 0.0
      %456 = vmatpush1.msra.mxu0 0.0
      %457 = vmatprep.subr.mxu0 0.0
      %458 = vmatpush1.msra.mxu0 0.0
      %459 = vmatprep.subr.mxu0 0.0
      %460 = vmatpush1.msra.mxu0 0.0
      %461 = vmatprep.subr.mxu0 0.0
      %462 = vmatpush1.msra.mxu0 0.0
      %463 = vmatprep.subr.mxu0 0.0
      %464 = vmatpush1.msra.mxu0 0.0
      %465 = vmatprep.subr.mxu0 0.0
      %466 = vmatpush1.msra.mxu0 0.0
      %467 = vmatprep.subr.mxu0 0.0
      %468 = vmatpush1.msra.mxu0 0.0
      %469 = vmatprep.subr.mxu0 0.0
      %470 = vmatpush1.msra.mxu0 0.0
      %471 = vmatprep.subr.mxu0 0.0
      %472 = vmatpush1.msra.mxu0 0.0
      %473 = vmatprep.subr.mxu0 0.0
      %474 = vmatpush1.msra.mxu0 0.0
      %475 = vmatprep.subr.mxu0 0.0
      %476 = vmatpush1.msra.mxu0 0.0
      %477 = vmatprep.subr.mxu0 0.0
      %478 = vmatpush1.msra.mxu0 0.0
      %479 = vmatprep.subr.mxu0 0.0
      %480 = vmatpush1.msra.mxu0 0.0
      %481 = vmatprep.subr.mxu0 0.0
      %482 = vmatpush1.msra.mxu0 0.0
      %483 = vmatprep.subr.mxu0 0.0
      %484 = vmatpush1.msra.mxu0 0.0
      %485 = vmatprep.subr.mxu0 0.0
      %486 = vmatpush1.msra.mxu0 0.0
      %487 = vmatprep.subr.mxu0 0.0
      %488 = vmatpush1.msra.mxu0 0.0
      %489 = vmatprep.subr.mxu0 0.0
      %490 = vmatpush1.msra.mxu0 0.0
      %491 = vmatprep.subr.mxu0 0.0
      %492 = vmatpush1.msra.mxu0 0.0
      %493 = vmatprep.subr.mxu0 0.0
      %494 = vmatpush1.msra.mxu0 0.0
      %495 = vmatprep.subr.mxu0 0.0
      %496 = vmatpush1.msra.mxu0 0.0
      %497 = vmatprep.subr.mxu0 0.0
      %498 = vmatpush1.msra.mxu0 0.0
      %499 = vmatprep.subr.mxu0 0.0
      %500 = vmatpush1.msra.mxu0 0.0
      %501 = vmatprep.subr.mxu0 0.0
      %502 = vmatpush1.msra.mxu0 0.0
      %503 = vmatprep.subr.mxu0 0.0
      %504 = vmatpush1.msra.mxu0 0.0
      %505 = vmatprep.mubr.f32.mxu0 0.0
      %v506 = vand.u32 %v220, 4294901760
      %v507 = vsub.f32 %v220, %v506
      %508 = vmatmul.mubr.f32.gmra.mrb[0].mxu0 %v507
      %v509 = vpop.f32.mrb[0].mxu0
      %v510 = vadd.f32 %v416, %v509
      %v511 = vpop.f32.mrb[0].mxu0
      %512 = vmatprep.mubr.f32.mxu0 0.0
      %v513 = vand.u32 %v223, 4294901760
      %v514 = vsub.f32 %v223, %v513
      %515 = vmatmul.mubr.f32.gmra.mrb[0].mxu0 %v514
      %v516 = vpop.f32.mrb[0].mxu0
      %v517 = vadd.f32 %v422, %v516
      %v518 = vpop.f32.mrb[0].mxu0
      %519 = vmatprep.mubr.f32.mxu0 0.0
      %v520 = vand.u32 %v226, 4294901760
      %v521 = vsub.f32 %v226, %v520
      %522 = vmatmul.mubr.f32.gmra.mrb[0].mxu0 %v521
      %v523 = vpop.f32.mrb[0].mxu0
      %v524 = vadd.f32 %v428, %v523
      %v525 = vpop.f32.mrb[0].mxu0
      %526 = vmatprep.mubr.f32.mxu0 0.0
      %v527 = vand.u32 %v229, 4294901760
      %v528 = vsub.f32 %v229, %v527
      %529 = vmatmul.mubr.f32.gmra.mrb[0].mxu0 %v528
      %v530 = vpop.f32.mrb[0].mxu0
      %v531 = vadd.f32 %v434, %v530
      %v532 = vpop.f32.mrb[0].mxu0
      %533 = vdwg.mxu0
      %534 = vmatprep.subr.mxu0 0.0
      %v535 = vand.u32 %v209, 4294901760
      %536 = vmatpush1.msra.mxu0 %v535
      %537 = vmatprep.subr.mxu0 0.0
      %v538 = vand.u32 %v210, 4294901760
      %539 = vmatpush1.msra.mxu0 %v538
      %540 = vmatprep.subr.mxu0 0.0
      %541 = vmatpush1.msra.mxu0 0.0
      %542 = vmatprep.subr.mxu0 0.0
      %543 = vmatpush1.msra.mxu0 0.0
      %544 = vmatprep.subr.mxu0 0.0
      %545 = vmatpush1.msra.mxu0 0.0
      %546 = vmatprep.subr.mxu0 0.0
      %547 = vmatpush1.msra.mxu0 0.0
      %548 = vmatprep.subr.mxu0 0.0
      %549 = vmatpush1.msra.mxu0 0.0
      %550 = vmatprep.subr.mxu0 0.0
      %551 = vmatpush1.msra.mxu0 0.0
      %552 = vmatprep.subr.mxu0 0.0
      %553 = vmatpush1.msra.mxu0 0.0
      %554 = vmatprep.subr.mxu0 0.0
      %555 = vmatpush1.msra.mxu0 0.0
      %556 = vmatprep.subr.mxu0 0.0
      %557 = vmatpush1.msra.mxu0 0.0
      %558 = vmatprep.subr.mxu0 0.0
      %559 = vmatpush1.msra.mxu0 0.0
      %560 = vmatprep.subr.mxu0 0.0
      %561 = vmatpush1.msra.mxu0 0.0
      %562 = vmatprep.subr.mxu0 0.0
      %563 = vmatpush1.msra.mxu0 0.0
      %564 = vmatprep.subr.mxu0 0.0
      %565 = vmatpush1.msra.mxu0 0.0
      %566 = vmatprep.subr.mxu0 0.0
      %567 = vmatpush1.msra.mxu0 0.0
      %568 = vmatprep.subr.mxu0 0.0
      %569 = vmatpush1.msra.mxu0 0.0
      %570 = vmatprep.subr.mxu0 0.0
      %571 = vmatpush1.msra.mxu0 0.0
      %572 = vmatprep.subr.mxu0 0.0
      %573 = vmatpush1.msra.mxu0 0.0
      %574 = vmatprep.subr.mxu0 0.0
      %575 = vmatpush1.msra.mxu0 0.0
      %576 = vmatprep.subr.mxu0 0.0
      %577 = vmatpush1.msra.mxu0 0.0
      %578 = vmatprep.subr.mxu0 0.0
      %579 = vmatpush1.msra.mxu0 0.0
      %580 = vmatprep.subr.mxu0 0.0
      %581 = vmatpush1.msra.mxu0 0.0
      %582 = vmatprep.subr.mxu0 0.0
      %583 = vmatpush1.msra.mxu0 0.0
      %584 = vmatprep.subr.mxu0 0.0
      %585 = vmatpush1.msra.mxu0 0.0
      %586 = vmatprep.subr.mxu0 0.0
      %587 = vmatpush1.msra.mxu0 0.0
      %588 = vmatprep.subr.mxu0 0.0
      %589 = vmatpush1.msra.mxu0 0.0
      %590 = vmatprep.subr.mxu0 0.0
      %591 = vmatpush1.msra.mxu0 0.0
      %592 = vmatprep.subr.mxu0 0.0
      %593 = vmatpush1.msra.mxu0 0.0
      %594 = vmatprep.subr.mxu0 0.0
      %595 = vmatpush1.msra.mxu0 0.0
      %596 = vmatprep.subr.mxu0 0.0
      %597 = vmatpush1.msra.mxu0 0.0
      %598 = vmatprep.subr.mxu0 0.0
      %599 = vmatpush1.msra.mxu0 0.0
      %600 = vmatprep.mubr.f32.mxu0 0.0
      %v601 = vand.u32 %v220, 4294901760
      %v602 = vsub.f32 %v220, %v601
      %v603 = vand.u32 %v602, 4294901760
      %604 = vmatmul.mubr.f32.gmra.mrb[0].mxu0 %v603
      %v605 = vpop.f32.mrb[0].mxu0
      %v606 = vadd.f32 %v510, %v605
      %v607 = vpop.f32.mrb[0].mxu0
      %608 = vmatprep.mubr.f32.mxu0 0.0
      %v609 = vand.u32 %v223, 4294901760
      %v610 = vsub.f32 %v223, %v609
      %v611 = vand.u32 %v610, 4294901760
      %612 = vmatmul.mubr.f32.gmra.mrb[0].mxu0 %v611
      %v613 = vpop.f32.mrb[0].mxu0
      %v614 = vadd.f32 %v517, %v613
      %v615 = vpop.f32.mrb[0].mxu0
      %616 = vmatprep.mubr.f32.mxu0 0.0
      %v617 = vand.u32 %v226, 4294901760
      %v618 = vsub.f32 %v226, %v617
      %v619 = vand.u32 %v618, 4294901760
      %620 = vmatmul.mubr.f32.gmra.mrb[0].mxu0 %v619
      %v621 = vpop.f32.mrb[0].mxu0
      %v622 = vadd.f32 %v524, %v621
      %v623 = vpop.f32.mrb[0].mxu0
      %624 = vmatprep.mubr.f32.mxu0 0.0
      %v625 = vand.u32 %v229, 4294901760
      %v626 = vsub.f32 %v229, %v625
      %v627 = vand.u32 %v626, 4294901760
      %628 = vmatmul.mubr.f32.gmra.mrb[0].mxu0 %v627
      %v629 = vpop.f32.mrb[0].mxu0
      %v630 = vadd.f32 %v531, %v629
      %v631 = vpop.f32.mrb[0].mxu0
      %632 = vdwg.mxu0
      %633 = vmatprep.subr.mxu0 0.0
      %v634 = vand.u32 %v209, 4294901760
      %v635 = vsub.f32 %v209, %v634
      %v636 = vand.u32 %v635, 4294901760
      %637 = vmatpush1.msra.mxu0 %v636
      %638 = vmatprep.subr.mxu0 0.0
      %v639 = vand.u32 %v210, 4294901760
      %v640 = vsub.f32 %v210, %v639
      %v641 = vand.u32 %v640, 4294901760
      %642 = vmatpush1.msra.mxu0 %v641
      %643 = vmatprep.subr.mxu0 0.0
      %644 = vmatpush1.msra.mxu0 0.0
      %645 = vmatprep.subr.mxu0 0.0
      %646 = vmatpush1.msra.mxu0 0.0
      %647 = vmatprep.subr.mxu0 0.0
      %648 = vmatpush1.msra.mxu0 0.0
      %649 = vmatprep.subr.mxu0 0.0
      %650 = vmatpush1.msra.mxu0 0.0
      %651 = vmatprep.subr.mxu0 0.0
      %652 = vmatpush1.msra.mxu0 0.0
      %653 = vmatprep.subr.mxu0 0.0
      %654 = vmatpush1.msra.mxu0 0.0
      %655 = vmatprep.subr.mxu0 0.0
      %656 = vmatpush1.msra.mxu0 0.0
      %657 = vmatprep.subr.mxu0 0.0
      %658 = vmatpush1.msra.mxu0 0.0
      %659 = vmatprep.subr.mxu0 0.0
      %660 = vmatpush1.msra.mxu0 0.0
      %661 = vmatprep.subr.mxu0 0.0
      %662 = vmatpush1.msra.mxu0 0.0
      %663 = vmatprep.subr.mxu0 0.0
      %664 = vmatpush1.msra.mxu0 0.0
      %665 = vmatprep.subr.mxu0 0.0
      %666 = vmatpush1.msra.mxu0 0.0
      %667 = vmatprep.subr.mxu0 0.0
      %668 = vmatpush1.msra.mxu0 0.0
      %669 = vmatprep.subr.mxu0 0.0
      %670 = vmatpush1.msra.mxu0 0.0
      %671 = vmatprep.subr.mxu0 0.0
      %672 = vmatpush1.msra.mxu0 0.0
      %673 = vmatprep.subr.mxu0 0.0
      %674 = vmatpush1.msra.mxu0 0.0
      %675 = vmatprep.subr.mxu0 0.0
      %676 = vmatpush1.msra.mxu0 0.0
      %677 = vmatprep.subr.mxu0 0.0
      %678 = vmatpush1.msra.mxu0 0.0
      %679 = vmatprep.subr.mxu0 0.0
      %680 = vmatpush1.msra.mxu0 0.0
      %681 = vmatprep.subr.mxu0 0.0
      %682 = vmatpush1.msra.mxu0 0.0
      %683 = vmatprep.subr.mxu0 0.0
      %684 = vmatpush1.msra.mxu0 0.0
      %685 = vmatprep.subr.mxu0 0.0
      %686 = vmatpush1.msra.mxu0 0.0
      %687 = vmatprep.subr.mxu0 0.0
      %688 = vmatpush1.msra.mxu0 0.0
      %689 = vmatprep.subr.mxu0 0.0
      %690 = vmatpush1.msra.mxu0 0.0
      %691 = vmatprep.subr.mxu0 0.0
      %692 = vmatpush1.msra.mxu0 0.0
      %693 = vmatprep.subr.mxu0 0.0
      %694 = vmatpush1.msra.mxu0 0.0
      %695 = vmatprep.subr.mxu0 0.0
      %696 = vmatpush1.msra.mxu0 0.0
      %697 = vmatprep.subr.mxu0 0.0
      %698 = vmatpush1.msra.mxu0 0.0
      %699 = vmatprep.subr.mxu0 0.0
      %700 = vmatpush1.msra.mxu0 0.0
      %701 = vmatprep.subr.mxu0 0.0
      %702 = vmatpush1.msra.mxu0 0.0
      %703 = vmatprep.mubr.f32.mxu0 0.0
      %v704 = vand.u32 %v220, 4294901760
      %705 = vmatmul.mubr.f32.gmra.mrb[0].mxu0 %v704
      %v706 = vpop.f32.mrb[0].mxu0
      %v707 = vadd.f32 %v606, %v706
      %v708 = vpop.f32.mrb[0].mxu0
      %709 = vmatprep.mubr.f32.mxu0 0.0
      %v710 = vand.u32 %v223, 4294901760
      %711 = vmatmul.mubr.f32.gmra.mrb[0].mxu0 %v710
      %v712 = vpop.f32.mrb[0].mxu0
      %v713 = vadd.f32 %v614, %v712
      %v714 = vpop.f32.mrb[0].mxu0
      %715 = vmatprep.mubr.f32.mxu0 0.0
      %v716 = vand.u32 %v226, 4294901760
      %717 = vmatmul.mubr.f32.gmra.mrb[0].mxu0 %v716
      %v718 = vpop.f32.mrb[0].mxu0
      %v719 = vadd.f32 %v622, %v718
      %v720 = vpop.f32.mrb[0].mxu0
      %721 = vmatprep.mubr.f32.mxu0 0.0
      %v722 = vand.u32 %v229, 4294901760
      %723 = vmatmul.mubr.f32.gmra.mrb[0].mxu0 %v722
      %v724 = vpop.f32.mrb[0].mxu0
      %v725 = vadd.f32 %v630, %v724
      %v726 = vpop.f32.mrb[0].mxu0
      %727 = vdwg.mxu0
      %728 = vmatprep.subr.mxu0 0.0
      %v729 = vand.u32 %v209, 4294901760
      %730 = vmatpush1.msra.mxu0 %v729
      %731 = vmatprep.subr.mxu0 0.0
      %v732 = vand.u32 %v210, 4294901760
      %733 = vmatpush1.msra.mxu0 %v732
      %734 = vmatprep.subr.mxu0 0.0
      %735 = vmatpush1.msra.mxu0 0.0
      %736 = vmatprep.subr.mxu0 0.0
      %737 = vmatpush1.msra.mxu0 0.0
      %738 = vmatprep.subr.mxu0 0.0
      %739 = vmatpush1.msra.mxu0 0.0
      %740 = vmatprep.subr.mxu0 0.0
      %741 = vmatpush1.msra.mxu0 0.0
      %742 = vmatprep.subr.mxu0 0.0
      %743 = vmatpush1.msra.mxu0 0.0
      %744 = vmatprep.subr.mxu0 0.0
      %745 = vmatpush1.msra.mxu0 0.0
      %746 = vmatprep.subr.mxu0 0.0
      %747 = vmatpush1.msra.mxu0 0.0
      %748 = vmatprep.subr.mxu0 0.0
      %749 = vmatpush1.msra.mxu0 0.0
      %750 = vmatprep.subr.mxu0 0.0
      %751 = vmatpush1.msra.mxu0 0.0
      %752 = vmatprep.subr.mxu0 0.0
      %753 = vmatpush1.msra.mxu0 0.0
      %754 = vmatprep.subr.mxu0 0.0
      %755 = vmatpush1.msra.mxu0 0.0
      %756 = vmatprep.subr.mxu0 0.0
      %757 = vmatpush1.msra.mxu0 0.0
      %758 = vmatprep.subr.mxu0 0.0
      %759 = vmatpush1.msra.mxu0 0.0
      %760 = vmatprep.subr.mxu0 0.0
      %761 = vmatpush1.msra.mxu0 0.0
      %762 = vmatprep.subr.mxu0 0.0
      %763 = vmatpush1.msra.mxu0 0.0
      %764 = vmatprep.subr.mxu0 0.0
      %765 = vmatpush1.msra.mxu0 0.0
      %766 = vmatprep.subr.mxu0 0.0
      %767 = vmatpush1.msra.mxu0 0.0
      %768 = vmatprep.subr.mxu0 0.0
      %769 = vmatpush1.msra.mxu0 0.0
      %770 = vmatprep.subr.mxu0 0.0
      %771 = vmatpush1.msra.mxu0 0.0
      %772 = vmatprep.subr.mxu0 0.0
      %773 = vmatpush1.msra.mxu0 0.0
      %774 = vmatprep.subr.mxu0 0.0
      %775 = vmatpush1.msra.mxu0 0.0
      %776 = vmatprep.subr.mxu0 0.0
      %777 = vmatpush1.msra.mxu0 0.0
      %778 = vmatprep.subr.mxu0 0.0
      %779 = vmatpush1.msra.mxu0 0.0
      %780 = vmatprep.subr.mxu0 0.0
      %781 = vmatpush1.msra.mxu0 0.0
      %782 = vmatprep.subr.mxu0 0.0
      %783 = vmatpush1.msra.mxu0 0.0
      %784 = vmatprep.subr.mxu0 0.0
      %785 = vmatpush1.msra.mxu0 0.0
      %786 = vmatprep.subr.mxu0 0.0
      %787 = vmatpush1.msra.mxu0 0.0
      %788 = vmatprep.subr.mxu0 0.0
      %789 = vmatpush1.msra.mxu0 0.0
      %790 = vmatprep.subr.mxu0 0.0
      %791 = vmatpush1.msra.mxu0 0.0
      %792 = vmatprep.subr.mxu0 0.0
      %793 = vmatpush1.msra.mxu0 0.0
      %794 = vmatprep.mubr.f32.mxu0 0.0
      %v795 = vand.u32 %v220, 4294901760
      %796 = vmatmul.mubr.f32.gmra.mrb[0].mxu0 %v795
      %v797 = vpop.f32.mrb[0].mxu0
      %v798 = vadd.f32 %v707, %v797
      %v799 = vpop.f32.mrb[0].mxu0
      %800 = vmatprep.mubr.f32.mxu0 0.0
      %v801 = vand.u32 %v223, 4294901760
      %802 = vmatmul.mubr.f32.gmra.mrb[0].mxu0 %v801
      %v803 = vpop.f32.mrb[0].mxu0
      %v804 = vadd.f32 %v713, %v803
      %v805 = vpop.f32.mrb[0].mxu0
      %806 = vmatprep.mubr.f32.mxu0 0.0
      %v807 = vand.u32 %v226, 4294901760
      %808 = vmatmul.mubr.f32.gmra.mrb[0].mxu0 %v807
      %v809 = vpop.f32.mrb[0].mxu0
      %v810 = vadd.f32 %v719, %v809
      %v811 = vpop.f32.mrb[0].mxu0
      %812 = vmatprep.mubr.f32.mxu0 0.0
      %v813 = vand.u32 %v229, 4294901760
      %814 = vmatmul.mubr.f32.gmra.mrb[0].mxu0 %v813
      %v815 = vpop.f32.mrb[0].mxu0
      %v816 = vadd.f32 %v725, %v815
      %v817 = vpop.f32.mrb[0].mxu0
      %818 = vdwg.mxu0
      %vm819 = vcmask 64512
      %820 = vst.msk [vmem:[%s207] sm:$0xff] %vm819, %v798
      %821 = vst.msk [vmem:[%s207 + $0x8] sm:$0xff] %vm819, %v804
      %822 = vst.msk [vmem:[%s207 + $0x10] sm:$0xff] %vm819, %v810
      %823 = vst.msk [vmem:[%s207 + $0x18] sm:$0xff] %vm819, %v816
      %828 = vrot.lane.b32.xlu0 %v798, 120
      %v829 = vpop.permute.xlu0 %828
      %830 = vrot.lane.b32.xlu0 %v804, 120
      %v831 = vpop.permute.xlu0 %830
      %832 = vrot.lane.b32.xlu0 %v810, 120
      %v833 = vpop.permute.xlu0 %832
      %834 = vrot.lane.b32.xlu0 %v816, 120
      %v835 = vpop.permute.xlu0 %834
      %s840 = scalar_lea.vmem %s207, 32
      %841 = vst.msk [vmem:[%s840] sm:$0xff] %vm819, %v829
      %842 = vst.msk [vmem:[%s840 + $0x8] sm:$0xff] %vm819, %v831
      %843 = vst.msk [vmem:[%s840 + $0x10] sm:$0xff] %vm819, %v833
      %844 = vst.msk [vmem:[%s840 + $0x18] sm:$0xff] %vm819, %v835
      %s845 = scalar_lea.vmem %s194, 1
      %v846 = vld [vmem:[%s845] ss:$2 sm:$0xff]
      %s847 = scalar_lea.vmem %s194, 17
      %v848 = vld [vmem:[%s847] ss:$2 sm:$0xff]
      %s849 = scalar_lea.vmem %s194, 33
      %v850 = vld [vmem:[%s849] ss:$2 sm:$0xff]
      %s851 = scalar_lea.vmem %s194, 49
      %v852 = vld [vmem:[%s851] ss:$2 sm:$0xff]
      %v854 = vsel %vm218, %v846, 0
      %v857 = vsel %vm218, %v848, 0
      %v860 = vsel %vm218, %v850, 0
      %v863 = vsel %vm218, %v852, 0
      %865 = vmatprep.subr.mxu0 0.0
      %v866 = vand.u32 %v209, 4294901760
      %867 = vmatpush1.msra.mxu0 %v866
      %868 = vmatprep.subr.mxu0 0.0
      %v869 = vand.u32 %v210, 4294901760
      %870 = vmatpush1.msra.mxu0 %v869
      %871 = vmatprep.subr.mxu0 0.0
      %872 = vmatpush1.msra.mxu0 0.0
      %873 = vmatprep.subr.mxu0 0.0
      %874 = vmatpush1.msra.mxu0 0.0
      %875 = vmatprep.subr.mxu0 0.0
      %876 = vmatpush1.msra.mxu0 0.0
      %877 = vmatprep.subr.mxu0 0.0
      %878 = vmatpush1.msra.mxu0 0.0
      %879 = vmatprep.subr.mxu0 0.0
      %880 = vmatpush1.msra.mxu0 0.0
      %881 = vmatprep.subr.mxu0 0.0
      %882 = vmatpush1.msra.mxu0 0.0
      %883 = vmatprep.subr.mxu0 0.0
      %884 = vmatpush1.msra.mxu0 0.0
      %885 = vmatprep.subr.mxu0 0.0
      %886 = vmatpush1.msra.mxu0 0.0
      %887 = vmatprep.subr.mxu0 0.0
      %888 = vmatpush1.msra.mxu0 0.0
      %889 = vmatprep.subr.mxu0 0.0
      %890 = vmatpush1.msra.mxu0 0.0
      %891 = vmatprep.subr.mxu0 0.0
      %892 = vmatpush1.msra.mxu0 0.0
      %893 = vmatprep.subr.mxu0 0.0
      %894 = vmatpush1.msra.mxu0 0.0
      %895 = vmatprep.subr.mxu0 0.0
      %896 = vmatpush1.msra.mxu0 0.0
      %897 = vmatprep.subr.mxu0 0.0
      %898 = vmatpush1.msra.mxu0 0.0
      %899 = vmatprep.subr.mxu0 0.0
      %900 = vmatpush1.msra.mxu0 0.0
      %901 = vmatprep.subr.mxu0 0.0
      %902 = vmatpush1.msra.mxu0 0.0
      %903 = vmatprep.subr.mxu0 0.0
      %904 = vmatpush1.msra.mxu0 0.0
      %905 = vmatprep.subr.mxu0 0.0
      %906 = vmatpush1.msra.mxu0 0.0
      %907 = vmatprep.subr.mxu0 0.0
      %908 = vmatpush1.msra.mxu0 0.0
      %909 = vmatprep.subr.mxu0 0.0
      %910 = vmatpush1.msra.mxu0 0.0
      %911 = vmatprep.subr.mxu0 0.0
      %912 = vmatpush1.msra.mxu0 0.0
      %913 = vmatprep.subr.mxu0 0.0
      %914 = vmatpush1.msra.mxu0 0.0
      %915 = vmatprep.subr.mxu0 0.0
      %916 = vmatpush1.msra.mxu0 0.0
      %917 = vmatprep.subr.mxu0 0.0
      %918 = vmatpush1.msra.mxu0 0.0
      %919 = vmatprep.subr.mxu0 0.0
      %920 = vmatpush1.msra.mxu0 0.0
      %921 = vmatprep.subr.mxu0 0.0
      %922 = vmatpush1.msra.mxu0 0.0
      %923 = vmatprep.subr.mxu0 0.0
      %924 = vmatpush1.msra.mxu0 0.0
      %925 = vmatprep.subr.mxu0 0.0
      %926 = vmatpush1.msra.mxu0 0.0
      %927 = vmatprep.subr.mxu0 0.0
      %928 = vmatpush1.msra.mxu0 0.0
      %929 = vmatprep.subr.mxu0 0.0
      %930 = vmatpush1.msra.mxu0 0.0
      %931 = vmatprep.mubr.f32.mxu0 0.0
      %v932 = vand.u32 %v854, 4294901760
      %v933 = vsub.f32 %v854, %v932
      %v934 = vand.u32 %v933, 4294901760
      %v935 = vsub.f32 %v933, %v934
      %v936 = vand.u32 %v935, 4294901760
      %937 = vmatmul.mubr.f32.gmra.mrb[0].mxu0 %v936
      %v938 = vpop.f32.mrb[0].mxu0
      %v939 = vadd.f32 0.0, %v938
      %v940 = vpop.f32.mrb[0].mxu0
      %941 = vmatprep.mubr.f32.mxu0 0.0
      %v942 = vand.u32 %v857, 4294901760
      %v943 = vsub.f32 %v857, %v942
      %v944 = vand.u32 %v943, 4294901760
      %v945 = vsub.f32 %v943, %v944
      %v946 = vand.u32 %v945, 4294901760
      %947 = vmatmul.mubr.f32.gmra.mrb[0].mxu0 %v946
      %v948 = vpop.f32.mrb[0].mxu0
      %v949 = vadd.f32 0.0, %v948
      %v950 = vpop.f32.mrb[0].mxu0
      %951 = vmatprep.mubr.f32.mxu0 0.0
      %v952 = vand.u32 %v860, 4294901760
      %v953 = vsub.f32 %v860, %v952
      %v954 = vand.u32 %v953, 4294901760
      %v955 = vsub.f32 %v953, %v954
      %v956 = vand.u32 %v955, 4294901760
      %957 = vmatmul.mubr.f32.gmra.mrb[0].mxu0 %v956
      %v958 = vpop.f32.mrb[0].mxu0
      %v959 = vadd.f32 0.0, %v958
      %v960 = vpop.f32.mrb[0].mxu0
      %961 = vmatprep.mubr.f32.mxu0 0.0
      %v962 = vand.u32 %v863, 4294901760
      %v963 = vsub.f32 %v863, %v962
      %v964 = vand.u32 %v963, 4294901760
      %v965 = vsub.f32 %v963, %v964
      %v966 = vand.u32 %v965, 4294901760
      %967 = vmatmul.mubr.f32.gmra.mrb[0].mxu0 %v966
      %v968 = vpop.f32.mrb[0].mxu0
      %v969 = vadd.f32 0.0, %v968
      %v970 = vpop.f32.mrb[0].mxu0
      %971 = vdwg.mxu0
      %972 = vmatprep.subr.mxu0 0.0
      %v973 = vand.u32 %v209, 4294901760
      %v974 = vsub.f32 %v209, %v973
      %v975 = vand.u32 %v974, 4294901760
      %v976 = vsub.f32 %v974, %v975
      %v977 = vand.u32 %v976, 4294901760
      %978 = vmatpush1.msra.mxu0 %v977
      %979 = vmatprep.subr.mxu0 0.0
      %v980 = vand.u32 %v210, 4294901760
      %v981 = vsub.f32 %v210, %v980
      %v982 = vand.u32 %v981, 4294901760
      %v983 = vsub.f32 %v981, %v982
      %v984 = vand.u32 %v983, 4294901760
      %985 = vmatpush1.msra.mxu0 %v984
      %986 = vmatprep.subr.mxu0 0.0
      %987 = vmatpush1.msra.mxu0 0.0
      %988 = vmatprep.subr.mxu0 0.0
      %989 = vmatpush1.msra.mxu0 0.0
      %990 = vmatprep.subr.mxu0 0.0
      %991 = vmatpush1.msra.mxu0 0.0
      %992 = vmatprep.subr.mxu0 0.0
      %993 = vmatpush1.msra.mxu0 0.0
      %994 = vmatprep.subr.mxu0 0.0
      %995 = vmatpush1.msra.mxu0 0.0
      %996 = vmatprep.subr.mxu0 0.0
      %997 = vmatpush1.msra.mxu0 0.0
      %998 = vmatprep.subr.mxu0 0.0
      %999 = vmatpush1.msra.mxu0 0.0
      %1000 = vmatprep.subr.mxu0 0.0
      %1001 = vmatpush1.msra.mxu0 0.0
      %1002 = vmatprep.subr.mxu0 0.0
      %1003 = vmatpush1.msra.mxu0 0.0
      %1004 = vmatprep.subr.mxu0 0.0
      %1005 = vmatpush1.msra.mxu0 0.0
      %1006 = vmatprep.subr.mxu0 0.0
      %1007 = vmatpush1.msra.mxu0 0.0
      %1008 = vmatprep.subr.mxu0 0.0
      %1009 = vmatpush1.msra.mxu0 0.0
      %1010 = vmatprep.subr.mxu0 0.0
      %1011 = vmatpush1.msra.mxu0 0.0
      %1012 = vmatprep.subr.mxu0 0.0
      %1013 = vmatpush1.msra.mxu0 0.0
      %1014 = vmatprep.subr.mxu0 0.0
      %1015 = vmatpush1.msra.mxu0 0.0
      %1016 = vmatprep.subr.mxu0 0.0
      %1017 = vmatpush1.msra.mxu0 0.0
      %1018 = vmatprep.subr.mxu0 0.0
      %1019 = vmatpush1.msra.mxu0 0.0
      %1020 = vmatprep.subr.mxu0 0.0
      %1021 = vmatpush1.msra.mxu0 0.0
      %1022 = vmatprep.subr.mxu0 0.0
      %1023 = vmatpush1.msra.mxu0 0.0
      %1024 = vmatprep.subr.mxu0 0.0
      %1025 = vmatpush1.msra.mxu0 0.0
      %1026 = vmatprep.subr.mxu0 0.0
      %1027 = vmatpush1.msra.mxu0 0.0
      %1028 = vmatprep.subr.mxu0 0.0
      %1029 = vmatpush1.msra.mxu0 0.0
      %1030 = vmatprep.subr.mxu0 0.0
      %1031 = vmatpush1.msra.mxu0 0.0
      %1032 = vmatprep.subr.mxu0 0.0
      %1033 = vmatpush1.msra.mxu0 0.0
      %1034 = vmatprep.subr.mxu0 0.0
      %1035 = vmatpush1.msra.mxu0 0.0
      %1036 = vmatprep.subr.mxu0 0.0
      %1037 = vmatpush1.msra.mxu0 0.0
      %1038 = vmatprep.subr.mxu0 0.0
      %1039 = vmatpush1.msra.mxu0 0.0
      %1040 = vmatprep.subr.mxu0 0.0
      %1041 = vmatpush1.msra.mxu0 0.0
      %1042 = vmatprep.subr.mxu0 0.0
      %1043 = vmatpush1.msra.mxu0 0.0
      %1044 = vmatprep.subr.mxu0 0.0
      %1045 = vmatpush1.msra.mxu0 0.0
      %1046 = vmatprep.mubr.f32.mxu0 0.0
      %v1047 = vand.u32 %v854, 4294901760
      %1048 = vmatmul.mubr.f32.gmra.mrb[0].mxu0 %v1047
      %v1049 = vpop.f32.mrb[0].mxu0
      %v1050 = vadd.f32 %v939, %v1049
      %v1051 = vpop.f32.mrb[0].mxu0
      %1052 = vmatprep.mubr.f32.mxu0 0.0
      %v1053 = vand.u32 %v857, 4294901760
      %1054 = vmatmul.mubr.f32.gmra.mrb[0].mxu0 %v1053
      %v1055 = vpop.f32.mrb[0].mxu0
      %v1056 = vadd.f32 %v949, %v1055
      %v1057 = vpop.f32.mrb[0].mxu0
      %1058 = vmatprep.mubr.f32.mxu0 0.0
      %v1059 = vand.u32 %v860, 4294901760
      %1060 = vmatmul.mubr.f32.gmra.mrb[0].mxu0 %v1059
      %v1061 = vpop.f32.mrb[0].mxu0
      %v1062 = vadd.f32 %v959, %v1061
      %v1063 = vpop.f32.mrb[0].mxu0
      %1064 = vmatprep.mubr.f32.mxu0 0.0
      %v1065 = vand.u32 %v863, 4294901760
      %1066 = vmatmul.mubr.f32.gmra.mrb[0].mxu0 %v1065
      %v1067 = vpop.f32.mrb[0].mxu0
      %v1068 = vadd.f32 %v969, %v1067
      %v1069 = vpop.f32.mrb[0].mxu0
      %1070 = vdwg.mxu0
      %1071 = vmatprep.subr.mxu0 0.0
      %v1072 = vand.u32 %v209, 4294901760
      %v1073 = vsub.f32 %v209, %v1072
      %1074 = vmatpush1.msra.mxu0 %v1073
      %1075 = vmatprep.subr.mxu0 0.0
      %v1076 = vand.u32 %v210, 4294901760
      %v1077 = vsub.f32 %v210, %v1076
      %1078 = vmatpush1.msra.mxu0 %v1077
      %1079 = vmatprep.subr.mxu0 0.0
      %1080 = vmatpush1.msra.mxu0 0.0
      %1081 = vmatprep.subr.mxu0 0.0
      %1082 = vmatpush1.msra.mxu0 0.0
      %1083 = vmatprep.subr.mxu0 0.0
      %1084 = vmatpush1.msra.mxu0 0.0
      %1085 = vmatprep.subr.mxu0 0.0
      %1086 = vmatpush1.msra.mxu0 0.0
      %1087 = vmatprep.subr.mxu0 0.0
      %1088 = vmatpush1.msra.mxu0 0.0
      %1089 = vmatprep.subr.mxu0 0.0
      %1090 = vmatpush1.msra.mxu0 0.0
      %1091 = vmatprep.subr.mxu0 0.0
      %1092 = vmatpush1.msra.mxu0 0.0
      %1093 = vmatprep.subr.mxu0 0.0
      %1094 = vmatpush1.msra.mxu0 0.0
      %1095 = vmatprep.subr.mxu0 0.0
      %1096 = vmatpush1.msra.mxu0 0.0
      %1097 = vmatprep.subr.mxu0 0.0
      %1098 = vmatpush1.msra.mxu0 0.0
      %1099 = vmatprep.subr.mxu0 0.0
      %1100 = vmatpush1.msra.mxu0 0.0
      %1101 = vmatprep.subr.mxu0 0.0
      %1102 = vmatpush1.msra.mxu0 0.0
      %1103 = vmatprep.subr.mxu0 0.0
      %1104 = vmatpush1.msra.mxu0 0.0
      %1105 = vmatprep.subr.mxu0 0.0
      %1106 = vmatpush1.msra.mxu0 0.0
      %1107 = vmatprep.subr.mxu0 0.0
      %1108 = vmatpush1.msra.mxu0 0.0
      %1109 = vmatprep.subr.mxu0 0.0
      %1110 = vmatpush1.msra.mxu0 0.0
      %1111 = vmatprep.subr.mxu0 0.0
      %1112 = vmatpush1.msra.mxu0 0.0
      %1113 = vmatprep.subr.mxu0 0.0
      %1114 = vmatpush1.msra.mxu0 0.0
      %1115 = vmatprep.subr.mxu0 0.0
      %1116 = vmatpush1.msra.mxu0 0.0
      %1117 = vmatprep.subr.mxu0 0.0
      %1118 = vmatpush1.msra.mxu0 0.0
      %1119 = vmatprep.subr.mxu0 0.0
      %1120 = vmatpush1.msra.mxu0 0.0
      %1121 = vmatprep.subr.mxu0 0.0
      %1122 = vmatpush1.msra.mxu0 0.0
      %1123 = vmatprep.subr.mxu0 0.0
      %1124 = vmatpush1.msra.mxu0 0.0
      %1125 = vmatprep.subr.mxu0 0.0
      %1126 = vmatpush1.msra.mxu0 0.0
      %1127 = vmatprep.subr.mxu0 0.0
      %1128 = vmatpush1.msra.mxu0 0.0
      %1129 = vmatprep.subr.mxu0 0.0
      %1130 = vmatpush1.msra.mxu0 0.0
      %1131 = vmatprep.subr.mxu0 0.0
      %1132 = vmatpush1.msra.mxu0 0.0
      %1133 = vmatprep.subr.mxu0 0.0
      %1134 = vmatpush1.msra.mxu0 0.0
      %1135 = vmatprep.subr.mxu0 0.0
      %1136 = vmatpush1.msra.mxu0 0.0
      %1137 = vmatprep.subr.mxu0 0.0
      %1138 = vmatpush1.msra.mxu0 0.0
      %1139 = vmatprep.mubr.f32.mxu0 0.0
      %v1140 = vand.u32 %v854, 4294901760
      %v1141 = vsub.f32 %v854, %v1140
      %1142 = vmatmul.mubr.f32.gmra.mrb[0].mxu0 %v1141
      %v1143 = vpop.f32.mrb[0].mxu0
      %v1144 = vadd.f32 %v1050, %v1143
      %v1145 = vpop.f32.mrb[0].mxu0
      %1146 = vmatprep.mubr.f32.mxu0 0.0
      %v1147 = vand.u32 %v857, 4294901760
      %v1148 = vsub.f32 %v857, %v1147
      %1149 = vmatmul.mubr.f32.gmra.mrb[0].mxu0 %v1148
      %v1150 = vpop.f32.mrb[0].mxu0
      %v1151 = vadd.f32 %v1056, %v1150
      %v1152 = vpop.f32.mrb[0].mxu0
      %1153 = vmatprep.mubr.f32.mxu0 0.0
      %v1154 = vand.u32 %v860, 4294901760
      %v1155 = vsub.f32 %v860, %v1154
      %1156 = vmatmul.mubr.f32.gmra.mrb[0].mxu0 %v1155
      %v1157 = vpop.f32.mrb[0].mxu0
      %v1158 = vadd.f32 %v1062, %v1157
      %v1159 = vpop.f32.mrb[0].mxu0
      %1160 = vmatprep.mubr.f32.mxu0 0.0
      %v1161 = vand.u32 %v863, 4294901760
      %v1162 = vsub.f32 %v863, %v1161
      %1163 = vmatmul.mubr.f32.gmra.mrb[0].mxu0 %v1162
      %v1164 = vpop.f32.mrb[0].mxu0
      %v1165 = vadd.f32 %v1068, %v1164
      %v1166 = vpop.f32.mrb[0].mxu0
      %1167 = vdwg.mxu0
      %1168 = vmatprep.subr.mxu0 0.0
      %v1169 = vand.u32 %v209, 4294901760
      %1170 = vmatpush1.msra.mxu0 %v1169
      %1171 = vmatprep.subr.mxu0 0.0
      %v1172 = vand.u32 %v210, 4294901760
      %1173 = vmatpush1.msra.mxu0 %v1172
      %1174 = vmatprep.subr.mxu0 0.0
      %1175 = vmatpush1.msra.mxu0 0.0
      %1176 = vmatprep.subr.mxu0 0.0
      %1177 = vmatpush1.msra.mxu0 0.0
      %1178 = vmatprep.subr.mxu0 0.0
      %1179 = vmatpush1.msra.mxu0 0.0
      %1180 = vmatprep.subr.mxu0 0.0
      %1181 = vmatpush1.msra.mxu0 0.0
      %1182 = vmatprep.subr.mxu0 0.0
      %1183 = vmatpush1.msra.mxu0 0.0
      %1184 = vmatprep.subr.mxu0 0.0
      %1185 = vmatpush1.msra.mxu0 0.0
      %1186 = vmatprep.subr.mxu0 0.0
      %1187 = vmatpush1.msra.mxu0 0.0
      %1188 = vmatprep.subr.mxu0 0.0
      %1189 = vmatpush1.msra.mxu0 0.0
      %1190 = vmatprep.subr.mxu0 0.0
      %1191 = vmatpush1.msra.mxu0 0.0
      %1192 = vmatprep.subr.mxu0 0.0
      %1193 = vmatpush1.msra.mxu0 0.0
      %1194 = vmatprep.subr.mxu0 0.0
      %1195 = vmatpush1.msra.mxu0 0.0
      %1196 = vmatprep.subr.mxu0 0.0
      %1197 = vmatpush1.msra.mxu0 0.0
      %1198 = vmatprep.subr.mxu0 0.0
      %1199 = vmatpush1.msra.mxu0 0.0
      %1200 = vmatprep.subr.mxu0 0.0
      %1201 = vmatpush1.msra.mxu0 0.0
      %1202 = vmatprep.subr.mxu0 0.0
      %1203 = vmatpush1.msra.mxu0 0.0
      %1204 = vmatprep.subr.mxu0 0.0
      %1205 = vmatpush1.msra.mxu0 0.0
      %1206 = vmatprep.subr.mxu0 0.0
      %1207 = vmatpush1.msra.mxu0 0.0
      %1208 = vmatprep.subr.mxu0 0.0
      %1209 = vmatpush1.msra.mxu0 0.0
      %1210 = vmatprep.subr.mxu0 0.0
      %1211 = vmatpush1.msra.mxu0 0.0
      %1212 = vmatprep.subr.mxu0 0.0
      %1213 = vmatpush1.msra.mxu0 0.0
      %1214 = vmatprep.subr.mxu0 0.0
      %1215 = vmatpush1.msra.mxu0 0.0
      %1216 = vmatprep.subr.mxu0 0.0
      %1217 = vmatpush1.msra.mxu0 0.0
      %1218 = vmatprep.subr.mxu0 0.0
      %1219 = vmatpush1.msra.mxu0 0.0
      %1220 = vmatprep.subr.mxu0 0.0
      %1221 = vmatpush1.msra.mxu0 0.0
      %1222 = vmatprep.subr.mxu0 0.0
      %1223 = vmatpush1.msra.mxu0 0.0
      %1224 = vmatprep.subr.mxu0 0.0
      %1225 = vmatpush1.msra.mxu0 0.0
      %1226 = vmatprep.subr.mxu0 0.0
      %1227 = vmatpush1.msra.mxu0 0.0
      %1228 = vmatprep.subr.mxu0 0.0
      %1229 = vmatpush1.msra.mxu0 0.0
      %1230 = vmatprep.subr.mxu0 0.0
      %1231 = vmatpush1.msra.mxu0 0.0
      %1232 = vmatprep.subr.mxu0 0.0
      %1233 = vmatpush1.msra.mxu0 0.0
      %1234 = vmatprep.mubr.f32.mxu0 0.0
      %v1235 = vand.u32 %v854, 4294901760
      %v1236 = vsub.f32 %v854, %v1235
      %v1237 = vand.u32 %v1236, 4294901760
      %1238 = vmatmul.mubr.f32.gmra.mrb[0].mxu0 %v1237
      %v1239 = vpop.f32.mrb[0].mxu0
      %v1240 = vadd.f32 %v1144, %v1239
      %v1241 = vpop.f32.mrb[0].mxu0
      %1242 = vmatprep.mubr.f32.mxu0 0.0
      %v1243 = vand.u32 %v857, 4294901760
      %v1244 = vsub.f32 %v857, %v1243
      %v1245 = vand.u32 %v1244, 4294901760
      %1246 = vmatmul.mubr.f32.gmra.mrb[0].mxu0 %v1245
      %v1247 = vpop.f32.mrb[0].mxu0
      %v1248 = vadd.f32 %v1151, %v1247
      %v1249 = vpop.f32.mrb[0].mxu0
      %1250 = vmatprep.mubr.f32.mxu0 0.0
      %v1251 = vand.u32 %v860, 4294901760
      %v1252 = vsub.f32 %v860, %v1251
      %v1253 = vand.u32 %v1252, 4294901760
      %1254 = vmatmul.mubr.f32.gmra.mrb[0].mxu0 %v1253
      %v1255 = vpop.f32.mrb[0].mxu0
      %v1256 = vadd.f32 %v1158, %v1255
      %v1257 = vpop.f32.mrb[0].mxu0
      %1258 = vmatprep.mubr.f32.mxu0 0.0
      %v1259 = vand.u32 %v863, 4294901760
      %v1260 = vsub.f32 %v863, %v1259
      %v1261 = vand.u32 %v1260, 4294901760
      %1262 = vmatmul.mubr.f32.gmra.mrb[0].mxu0 %v1261
      %v1263 = vpop.f32.mrb[0].mxu0
      %v1264 = vadd.f32 %v1165, %v1263
      %v1265 = vpop.f32.mrb[0].mxu0
      %1266 = vdwg.mxu0
      %1267 = vmatprep.subr.mxu0 0.0
      %v1268 = vand.u32 %v209, 4294901760
      %v1269 = vsub.f32 %v209, %v1268
      %v1270 = vand.u32 %v1269, 4294901760
      %1271 = vmatpush1.msra.mxu0 %v1270
      %1272 = vmatprep.subr.mxu0 0.0
      %v1273 = vand.u32 %v210, 4294901760
      %v1274 = vsub.f32 %v210, %v1273
      %v1275 = vand.u32 %v1274, 4294901760
      %1276 = vmatpush1.msra.mxu0 %v1275
      %1277 = vmatprep.subr.mxu0 0.0
      %1278 = vmatpush1.msra.mxu0 0.0
      %1279 = vmatprep.subr.mxu0 0.0
      %1280 = vmatpush1.msra.mxu0 0.0
      %1281 = vmatprep.subr.mxu0 0.0
      %1282 = vmatpush1.msra.mxu0 0.0
      %1283 = vmatprep.subr.mxu0 0.0
      %1284 = vmatpush1.msra.mxu0 0.0
      %1285 = vmatprep.subr.mxu0 0.0
      %1286 = vmatpush1.msra.mxu0 0.0
      %1287 = vmatprep.subr.mxu0 0.0
      %1288 = vmatpush1.msra.mxu0 0.0
      %1289 = vmatprep.subr.mxu0 0.0
      %1290 = vmatpush1.msra.mxu0 0.0
      %1291 = vmatprep.subr.mxu0 0.0
      %1292 = vmatpush1.msra.mxu0 0.0
      %1293 = vmatprep.subr.mxu0 0.0
      %1294 = vmatpush1.msra.mxu0 0.0
      %1295 = vmatprep.subr.mxu0 0.0
      %1296 = vmatpush1.msra.mxu0 0.0
      %1297 = vmatprep.subr.mxu0 0.0
      %1298 = vmatpush1.msra.mxu0 0.0
      %1299 = vmatprep.subr.mxu0 0.0
      %1300 = vmatpush1.msra.mxu0 0.0
      %1301 = vmatprep.subr.mxu0 0.0
      %1302 = vmatpush1.msra.mxu0 0.0
      %1303 = vmatprep.subr.mxu0 0.0
      %1304 = vmatpush1.msra.mxu0 0.0
      %1305 = vmatprep.subr.mxu0 0.0
      %1306 = vmatpush1.msra.mxu0 0.0
      %1307 = vmatprep.subr.mxu0 0.0
      %1308 = vmatpush1.msra.mxu0 0.0
      %1309 = vmatprep.subr.mxu0 0.0
      %1310 = vmatpush1.msra.mxu0 0.0
      %1311 = vmatprep.subr.mxu0 0.0
      %1312 = vmatpush1.msra.mxu0 0.0
      %1313 = vmatprep.subr.mxu0 0.0
      %1314 = vmatpush1.msra.mxu0 0.0
      %1315 = vmatprep.subr.mxu0 0.0
      %1316 = vmatpush1.msra.mxu0 0.0
      %1317 = vmatprep.subr.mxu0 0.0
      %1318 = vmatpush1.msra.mxu0 0.0
      %1319 = vmatprep.subr.mxu0 0.0
      %1320 = vmatpush1.msra.mxu0 0.0
      %1321 = vmatprep.subr.mxu0 0.0
      %1322 = vmatpush1.msra.mxu0 0.0
      %1323 = vmatprep.subr.mxu0 0.0
      %1324 = vmatpush1.msra.mxu0 0.0
      %1325 = vmatprep.subr.mxu0 0.0
      %1326 = vmatpush1.msra.mxu0 0.0
      %1327 = vmatprep.subr.mxu0 0.0
      %1328 = vmatpush1.msra.mxu0 0.0
      %1329 = vmatprep.subr.mxu0 0.0
      %1330 = vmatpush1.msra.mxu0 0.0
      %1331 = vmatprep.subr.mxu0 0.0
      %1332 = vmatpush1.msra.mxu0 0.0
      %1333 = vmatprep.subr.mxu0 0.0
      %1334 = vmatpush1.msra.mxu0 0.0
      %1335 = vmatprep.subr.mxu0 0.0
      %1336 = vmatpush1.msra.mxu0 0.0
      %1337 = vmatprep.mubr.f32.mxu0 0.0
      %v1338 = vand.u32 %v854, 4294901760
      %1339 = vmatmul.mubr.f32.gmra.mrb[0].mxu0 %v1338
      %v1340 = vpop.f32.mrb[0].mxu0
      %v1341 = vadd.f32 %v1240, %v1340
      %v1342 = vpop.f32.mrb[0].mxu0
      %1343 = vmatprep.mubr.f32.mxu0 0.0
      %v1344 = vand.u32 %v857, 4294901760
      %1345 = vmatmul.mubr.f32.gmra.mrb[0].mxu0 %v1344
      %v1346 = vpop.f32.mrb[0].mxu0
      %v1347 = vadd.f32 %v1248, %v1346
      %v1348 = vpop.f32.mrb[0].mxu0
      %1349 = vmatprep.mubr.f32.mxu0 0.0
      %v1350 = vand.u32 %v860, 4294901760
      %1351 = vmatmul.mubr.f32.gmra.mrb[0].mxu0 %v1350
      %v1352 = vpop.f32.mrb[0].mxu0
      %v1353 = vadd.f32 %v1256, %v1352
      %v1354 = vpop.f32.mrb[0].mxu0
      %1355 = vmatprep.mubr.f32.mxu0 0.0
      %v1356 = vand.u32 %v863, 4294901760
      %1357 = vmatmul.mubr.f32.gmra.mrb[0].mxu0 %v1356
      %v1358 = vpop.f32.mrb[0].mxu0
      %v1359 = vadd.f32 %v1264, %v1358
      %v1360 = vpop.f32.mrb[0].mxu0
      %1361 = vdwg.mxu0
      %1362 = vmatprep.subr.mxu0 0.0
      %v1363 = vand.u32 %v209, 4294901760
      %1364 = vmatpush1.msra.mxu0 %v1363
      %1365 = vmatprep.subr.mxu0 0.0
      %v1366 = vand.u32 %v210, 4294901760
      %1367 = vmatpush1.msra.mxu0 %v1366
      %1368 = vmatprep.subr.mxu0 0.0
      %1369 = vmatpush1.msra.mxu0 0.0
      %1370 = vmatprep.subr.mxu0 0.0
      %1371 = vmatpush1.msra.mxu0 0.0
      %1372 = vmatprep.subr.mxu0 0.0
      %1373 = vmatpush1.msra.mxu0 0.0
      %1374 = vmatprep.subr.mxu0 0.0
      %1375 = vmatpush1.msra.mxu0 0.0
      %1376 = vmatprep.subr.mxu0 0.0
      %1377 = vmatpush1.msra.mxu0 0.0
      %1378 = vmatprep.subr.mxu0 0.0
      %1379 = vmatpush1.msra.mxu0 0.0
      %1380 = vmatprep.subr.mxu0 0.0
      %1381 = vmatpush1.msra.mxu0 0.0
      %1382 = vmatprep.subr.mxu0 0.0
      %1383 = vmatpush1.msra.mxu0 0.0
      %1384 = vmatprep.subr.mxu0 0.0
      %1385 = vmatpush1.msra.mxu0 0.0
      %1386 = vmatprep.subr.mxu0 0.0
      %1387 = vmatpush1.msra.mxu0 0.0
      %1388 = vmatprep.subr.mxu0 0.0
      %1389 = vmatpush1.msra.mxu0 0.0
      %1390 = vmatprep.subr.mxu0 0.0
      %1391 = vmatpush1.msra.mxu0 0.0
      %1392 = vmatprep.subr.mxu0 0.0
      %1393 = vmatpush1.msra.mxu0 0.0
      %1394 = vmatprep.subr.mxu0 0.0
      %1395 = vmatpush1.msra.mxu0 0.0
      %1396 = vmatprep.subr.mxu0 0.0
      %1397 = vmatpush1.msra.mxu0 0.0
      %1398 = vmatprep.subr.mxu0 0.0
      %1399 = vmatpush1.msra.mxu0 0.0
      %1400 = vmatprep.subr.mxu0 0.0
      %1401 = vmatpush1.msra.mxu0 0.0
      %1402 = vmatprep.subr.mxu0 0.0
      %1403 = vmatpush1.msra.mxu0 0.0
      %1404 = vmatprep.subr.mxu0 0.0
      %1405 = vmatpush1.msra.mxu0 0.0
      %1406 = vmatprep.subr.mxu0 0.0
      %1407 = vmatpush1.msra.mxu0 0.0
      %1408 = vmatprep.subr.mxu0 0.0
      %1409 = vmatpush1.msra.mxu0 0.0
      %1410 = vmatprep.subr.mxu0 0.0
      %1411 = vmatpush1.msra.mxu0 0.0
      %1412 = vmatprep.subr.mxu0 0.0
      %1413 = vmatpush1.msra.mxu0 0.0
      %1414 = vmatprep.subr.mxu0 0.0
      %1415 = vmatpush1.msra.mxu0 0.0
      %1416 = vmatprep.subr.mxu0 0.0
      %1417 = vmatpush1.msra.mxu0 0.0
      %1418 = vmatprep.subr.mxu0 0.0
      %1419 = vmatpush1.msra.mxu0 0.0
      %1420 = vmatprep.subr.mxu0 0.0
      %1421 = vmatpush1.msra.mxu0 0.0
      %1422 = vmatprep.subr.mxu0 0.0
      %1423 = vmatpush1.msra.mxu0 0.0
      %1424 = vmatprep.subr.mxu0 0.0
      %1425 = vmatpush1.msra.mxu0 0.0
      %1426 = vmatprep.subr.mxu0 0.0
      %1427 = vmatpush1.msra.mxu0 0.0
      %1428 = vmatprep.mubr.f32.mxu0 0.0
      %v1429 = vand.u32 %v854, 4294901760
      %1430 = vmatmul.mubr.f32.gmra.mrb[0].mxu0 %v1429
      %v1431 = vpop.f32.mrb[0].mxu0
      %v1432 = vadd.f32 %v1341, %v1431
      %v1433 = vpop.f32.mrb[0].mxu0
      %1434 = vmatprep.mubr.f32.mxu0 0.0
      %v1435 = vand.u32 %v857, 4294901760
      %1436 = vmatmul.mubr.f32.gmra.mrb[0].mxu0 %v1435
      %v1437 = vpop.f32.mrb[0].mxu0
      %v1438 = vadd.f32 %v1347, %v1437
      %v1439 = vpop.f32.mrb[0].mxu0
      %1440 = vmatprep.mubr.f32.mxu0 0.0
      %v1441 = vand.u32 %v860, 4294901760
      %1442 = vmatmul.mubr.f32.gmra.mrb[0].mxu0 %v1441
      %v1443 = vpop.f32.mrb[0].mxu0
      %v1444 = vadd.f32 %v1353, %v1443
      %v1445 = vpop.f32.mrb[0].mxu0
      %1446 = vmatprep.mubr.f32.mxu0 0.0
      %v1447 = vand.u32 %v863, 4294901760
      %1448 = vmatmul.mubr.f32.gmra.mrb[0].mxu0 %v1447
      %v1449 = vpop.f32.mrb[0].mxu0
      %v1450 = vadd.f32 %v1359, %v1449
      %v1451 = vpop.f32.mrb[0].mxu0
      %1452 = vdwg.mxu0
      %s1453 = scalar_lea.vmem %s207, 64
      %1454 = vst.msk [vmem:[%s1453] sm:$0xff] %vm819, %v1432
      %1455 = vst.msk [vmem:[%s1453 + $0x8] sm:$0xff] %vm819, %v1438
      %1456 = vst.msk [vmem:[%s1453 + $0x10] sm:$0xff] %vm819, %v1444
      %1457 = vst.msk [vmem:[%s1453 + $0x18] sm:$0xff] %vm819, %v1450
      %1462 = vrot.lane.b32.xlu0 %v1432, 120
      %v1463 = vpop.permute.xlu0 %1462
      %1464 = vrot.lane.b32.xlu0 %v1438, 120
      %v1465 = vpop.permute.xlu0 %1464
      %1466 = vrot.lane.b32.xlu0 %v1444, 120
      %v1467 = vpop.permute.xlu0 %1466
      %1468 = vrot.lane.b32.xlu0 %v1450, 120
      %v1469 = vpop.permute.xlu0 %1468
      %s1474 = scalar_lea.vmem %s207, 96
      %1475 = vst.msk [vmem:[%s1474] sm:$0xff] %vm819, %v1463
      %1476 = vst.msk [vmem:[%s1474 + $0x8] sm:$0xff] %vm819, %v1465
      %1477 = vst.msk [vmem:[%s1474 + $0x10] sm:$0xff] %vm819, %v1467
      %1478 = vst.msk [vmem:[%s1474 + $0x18] sm:$0xff] %vm819, %v1469
      %s1479 = smul.u32 4, %s19
      %p1480 = scmp.lt.s32.totalorder %s18, 1
      %s1481 = scalar_select %p1480, %s18, 1
      %p1482 = scmp.lt.s32.totalorder %s1479, 3
      %s1483 = scalar_select %p1482, %s1479, 3
      %p1484 = scmp.lt.s32.totalorder %s20, 0
      %s1485 = scalar_select %p1484, %s20, 0
      %s1486 = sadd.s32 %s1485, %s1483
      %s1487 = smul.addr %s1481, 16
      %s1488 = sadd.s32 %s1486, %s1487
      %s1489 = smul.addr %s1488, 8
      %s1490 = scalar_lea.vmem %s2, %s1489
      // Predicated region
      $region29: #{tpu_custom_call.1} parent=27 // pred_check
        %p1491 = pneg %p105
      $region30: #{tpu_custom_call.1} parent=27 // pred_check_branch
        %1493 = sbr.rel (%p1491) target = $region32
      $region31: #{tpu_custom_call.1} parent=27 // pred_region
        %s1494 = smul.u32 4, %s19
      $region32: #{tpu_custom_call.1} parent=27 // pred_fallthru
        _
    $region28: #{tpu_custom_call.1} parent=5 // pred_fallthru
      _
    %p1495 = scmp.le.s32.totalorder 2, %s8
    // Predicated region
    $region33: #{tpu_custom_call.1} parent=5 // pred_check
      %p1496 = pneg %p1495
    $region34: #{tpu_custom_call.1} parent=5 // pred_check_branch
      %1498 = sbr.rel (%p1496) target = $region36
    $region35: #{tpu_custom_call.1} parent=5 // pred_region
      %s1499 = ssub.s32 %s8, 2
      // Predicated region
      $region37: #{tpu_custom_call.1} parent=35 // pred_check
        %p1500 = pneg %p111
      $region38: #{tpu_custom_call.1} parent=35 // pred_check_branch
        %1502 = sbr.rel (%p1500) target = $region40
      $region39: #{tpu_custom_call.1} parent=35 // pred_region
        %s1503 = smul.u32 4, %s22
        %p1504 = scmp.lt.s32.totalorder %s21, 1
        %s1505 = scalar_select %p1504, %s21, 1
        %p1506 = scmp.lt.s32.totalorder %s1503, 3
        %s1507 = scalar_select %p1506, %s1503, 3
        %p1508 = scmp.lt.s32.totalorder %s23, 0
        %s1509 = scalar_select %p1508, %s23, 0
        %s1510 = sadd.s32 %s1509, %s1507
        %s1511 = smul.addr %s1505, 16
        %s1512 = sadd.s32 %s1510, %s1511
        %s1513 = smul.addr %s1512, 8
        %s1514 = scalar_lea.vmem %s2, %s1513
      $region40: #{tpu_custom_call.1} parent=35 // pred_fallthru
        _
    $region36: #{tpu_custom_call.1} parent=5 // pred_fallthru
      _
  $region6: #{tpu_custom_call.1} parent=0 // loop_footer
    %s12 = sadd.s32 1, %s8
  $region7: #{tpu_custom_call.1} parent=0 // loop_footer_branch
    %7 = sbr.rel target = $region3
  $region8: #{tpu_custom_call.1} parent=0 // loop_exit
    _

</llo_original>
